<compile_context>
chip_gen: v6e
topology: v6e:2x2x1
jax: 0.10.0
libtpu: 0.0.40
codegen_flags: <defaults>
</compile_context>

<pallas_src>
import functools

import jax
import jax.numpy as jnp
import numpy as np
from jax.experimental import pallas as pl
from jax.experimental.pallas import tpu as pltpu


# -----------------------------------------------------------------------------
# Pallas kernel: TB images per grid step, fully fused SE.
# -----------------------------------------------------------------------------
def _se_kernel(inv_hw, x_ref, w1_ref, b1_ref, w2_ref, b2_ref, o_ref):
    # x_ref : (TB, C, HW)      native dtype
    # w1_ref: (TB, Cr, C)      fc1 weight, pre-broadcast over the block batch
    # b1_ref: (1, Cr, 1)
    # w2_ref: (TB, C, Cr)      fc2 weight, pre-broadcast over the block batch
    # b2_ref: (1, C, 1)
    x = x_ref[...]                                                  # (TB, C, HW)

    # Global average pool: lane-axis sum with f32 accumulation, * 1/(H*W).
    pooled = jnp.sum(x, axis=-1, keepdims=True,
                     dtype=jnp.float32) * jnp.float32(inv_hw)       # (TB, C, 1)

    # fc1 -> relu   (batched matmul, flash-attention 'bqk,bkd->bqd' pattern)
    w1 = w1_ref[...].astype(jnp.float32)                            # (TB, Cr, C)
    h = jnp.einsum("brc,bci->bri", w1, pooled,
                   preferred_element_type=jnp.float32)              # (TB, Cr, 1)
    h = jnp.maximum(h + b1_ref[...].astype(jnp.float32), 0.0)

    # fc2 -> sigmoid
    w2 = w2_ref[...].astype(jnp.float32)                            # (TB, C, Cr)
    s = jnp.einsum("bcr,bri->bci", w2, h,
                   preferred_element_type=jnp.float32)              # (TB, C, 1)
    s = jax.nn.sigmoid(s + b2_ref[...].astype(jnp.float32))

    # Channel-wise scale (lane broadcast), kept in the input dtype.
    o_ref[...] = (x * s.astype(x.dtype)).astype(o_ref.dtype)


# -----------------------------------------------------------------------------
# Wrapper
# -----------------------------------------------------------------------------
def se_module(x_nchw, w1, b1, w2, b2, *, max_tb=64, target_block_bytes=2 << 20):
    """SEModule forward.

    x_nchw: (B, C, H, W)
    w1: (C//r, C)  fc1 1x1-conv weight (torch layout, squeezed)
    b1: (C//r,)    fc1 bias
    w2: (C, C//r)  fc2 1x1-conv weight
    b2: (C,)       fc2 bias
    """
    B, C, H, W = x_nchw.shape
    Cr = w1.shape[0]
    HW = H * W
    x = x_nchw.reshape(B, C, HW)          # free reshape, keeps NCHW layout

    itemsize = jnp.dtype(x.dtype).itemsize
    bytes_per_image = C * HW * itemsize

    # Block-batch size: big enough to amortize per-step overhead (~>=1-2 MiB),
    # capped so 2x(in)+2x(out) buffers stay well inside VMEM on every chip.
    tb = int(min(B, max_tb, max(1, target_block_bytes // bytes_per_image)))
    # Prefer >=2 grid steps (v7x has 2 TensorCores) when blocks stay >= ~1 MiB.
    if tb == B and B > 1 and (pl.cdiv(B, 2) * bytes_per_image) >= (1 << 20):
        tb = pl.cdiv(B, 2)
    grid = (pl.cdiv(B, tb),)

    block_bytes = tb * bytes_per_image
    # 2x in + 2x out double buffers + weights + slack; clamp to sane range.
    vmem_limit = int(min(96 << 20, max(16 << 20, 5 * block_bytes + (4 << 20))))

    # Pre-broadcast the tiny FC weights over the block batch (DMA'd once thanks
    # to the constant index_map) and reshape biases to (1, ·, 1).
    w1_b = jnp.broadcast_to(w1[None], (tb, Cr, C))
    w2_b = jnp.broadcast_to(w2[None], (tb, C, Cr))
    b1_r = b1.reshape(1, Cr, 1)
    b2_r = b2.reshape(1, C, 1)

    out = pl.pallas_call(
        functools.partial(_se_kernel, 1.0 / HW),
        out_shape=jax.ShapeDtypeStruct((B, C, HW), x.dtype),
        grid=grid,
        in_specs=[
            pl.BlockSpec((tb, C, HW), lambda i: (i, 0, 0)),
            pl.BlockSpec((tb, Cr, C), lambda i: (0, 0, 0)),
            pl.BlockSpec((1, Cr, 1), lambda i: (0, 0, 0)),
            pl.BlockSpec((tb, C, Cr), lambda i: (0, 0, 0)),
            pl.BlockSpec((1, C, 1), lambda i: (0, 0, 0)),
        ],
        out_specs=pl.BlockSpec((tb, C, HW), lambda i: (i, 0, 0)),
        compiler_params=pltpu.CompilerParams(
            dimension_semantics=("parallel",),
            vmem_limit_bytes=vmem_limit),
    )(x, w1_b, b1_r, w2_b, b2_r)

    return out.reshape(B, C, H, W)


# -----------------------------------------------------------------------------
# Pure-JAX reference (correctness check only)
# -----------------------------------------------------------------------------
def se_module_ref(x, w1, b1, w2, b2):
    pooled = jnp.mean(x, axis=(2, 3))                             # (B, C)
    h = jax.nn.relu(pooled @ w1.T + b1)                           # (B, Cr)
    s = jax.nn.sigmoid(h @ w2.T + b2)                             # (B, C)
    return x * s[:, :, None, None]


# -----------------------------------------------------------------------------
# Deterministic example
# -----------------------------------------------------------------------------
if __name__ == "__main__":
    B, C, H, W = 8, 32, 16, 16
    reduction = 4
    Cr = C // reduction

    key = jax.random.PRNGKey(0)
    kx, k1, k2, k3, k4 = jax.random.split(key, 5)
    x = jax.random.normal(kx, (B, C, H, W), jnp.float32)
    w1 = jax.random.normal(k1, (Cr, C), jnp.float32) / np.sqrt(C)
    b1 = jax.random.normal(k2, (Cr,), jnp.float32) * 0.01
    w2 = jax.random.normal(k3, (C, Cr), jnp.float32) / np.sqrt(Cr)
    b2 = jax.random.normal(k4, (C,), jnp.float32) * 0.01

    out = jax.block_until_ready(se_module(x, w1, b1, w2, b2))

    ref = jax.block_until_ready(se_module_ref(x, w1, b1, w2, b2))
    np.testing.assert_allclose(np.asarray(out), np.asarray(ref),
                               rtol=1e-4, atol=1e-5)
    assert out.shape == (B, C, H, W)

    print("KERNEL_OK")
</pallas_src>

<mosaic_0001>
module attributes {stable_mosaic.version = 11 : i64} {
  func.func @_se_kernel(%arg0: i32, %arg1: memref<8x32x256xf32, #tpu.memory_space<vmem>>, %arg2: memref<8x8x32xf32, #tpu.memory_space<vmem>>, %arg3: memref<1x8x1xf32, #tpu.memory_space<vmem>>, %arg4: memref<8x32x8xf32, #tpu.memory_space<vmem>>, %arg5: memref<1x32x1xf32, #tpu.memory_space<vmem>>, %arg6: memref<8x32x256xf32, #tpu.memory_space<vmem>>) attributes {dimension_semantics = [#tpu.dimension_semantics<parallel>], iteration_bounds = array<i64: 1>, scalar_prefetch = 0 : i64, scratch_operands = 0 : i64, tpu.core_type = #tpu.core_type<tc>, window_params = [{transform_indices = @transform_0, window_bounds = array<i64: 8, 32, 256>}, {pipeline_mode = #tpu.pipeline_mode<synchronous>, transform_indices = @transform_1, window_bounds = array<i64: 8, 8, 32>}, {pipeline_mode = #tpu.pipeline_mode<synchronous>, transform_indices = @transform_2, window_bounds = array<i64: 1, 8, 1>}, {pipeline_mode = #tpu.pipeline_mode<synchronous>, transform_indices = @transform_3, window_bounds = array<i64: 8, 32, 8>}, {pipeline_mode = #tpu.pipeline_mode<synchronous>, transform_indices = @transform_4, window_bounds = array<i64: 1, 32, 1>}, {transform_indices = @transform_5, window_bounds = array<i64: 8, 32, 256>}]} {
    %c0 = arith.constant 0 : index
    %c0_0 = arith.constant 0 : index
    %c0_1 = arith.constant 0 : index
    %0 = vector.load %arg1[%c0, %c0_0, %c0_1] : memref<8x32x256xf32, #tpu.memory_space<vmem>>, vector<8x32x256xf32>
    %cst = arith.constant dense<0.000000e+00> : vector<8x32xf32>
    %1 = vector.multi_reduction <add>, %0, %cst [2] : vector<8x32x256xf32> to vector<8x32xf32>
    %2 = vector.shape_cast %1 : vector<8x32xf32> to vector<8x32x1xf32>
    %cst_2 = arith.constant 3.906250e-03 : f32
    %3 = vector.broadcast %cst_2 : f32 to vector<8x32x1xf32>
    %4 = arith.mulf %2, %3 : vector<8x32x1xf32>
    %c0_3 = arith.constant 0 : index
    %c0_4 = arith.constant 0 : index
    %c0_5 = arith.constant 0 : index
    %5 = vector.load %arg2[%c0_3, %c0_4, %c0_5] : memref<8x8x32xf32, #tpu.memory_space<vmem>>, vector<8x8x32xf32>
    "tpu.trace_start"() <{level = 10 : i32, message = "brc,bci->bri"}> : () -> ()
    %cst_6 = arith.constant dense<0.000000e+00> : vector<8x8x1xf32>
    %6 = tpu.matmul %5, %4, %cst_6 {dimension_numbers = #tpu.dot_dimension_numbers<[2], [1], [1], [2], [0, 0, 0, 1, 1, 2], [0], [0]>} : vector<8x8x32xf32>, vector<8x32x1xf32>, vector<8x8x1xf32> -> vector<8x8x1xf32>
    "tpu.trace_stop"() : () -> ()
    %c0_7 = arith.constant 0 : index
    %c0_8 = arith.constant 0 : index
    %c0_9 = arith.constant 0 : index
    %7 = vector.load %arg3[%c0_7, %c0_8, %c0_9] : memref<1x8x1xf32, #tpu.memory_space<vmem>>, vector<1x8x1xf32>
    %8 = vector.broadcast %7 : vector<1x8x1xf32> to vector<8x8x1xf32>
    %9 = arith.addf %6, %8 : vector<8x8x1xf32>
    %cst_10 = arith.constant 0.000000e+00 : f32
    %10 = vector.broadcast %cst_10 : f32 to vector<8x8x1xf32>
    %11 = arith.maximumf %9, %10 : vector<8x8x1xf32>
    %c0_11 = arith.constant 0 : index
    %c0_12 = arith.constant 0 : index
    %c0_13 = arith.constant 0 : index
    %12 = vector.load %arg4[%c0_11, %c0_12, %c0_13] : memref<8x32x8xf32, #tpu.memory_space<vmem>>, vector<8x32x8xf32>
    "tpu.trace_start"() <{level = 10 : i32, message = "bcr,bri->bci"}> : () -> ()
    %cst_14 = arith.constant dense<0.000000e+00> : vector<8x32x1xf32>
    %13 = tpu.matmul %12, %11, %cst_14 {dimension_numbers = #tpu.dot_dimension_numbers<[2], [1], [1], [2], [0, 0, 0, 1, 1, 2], [0], [0]>} : vector<8x32x8xf32>, vector<8x8x1xf32>, vector<8x32x1xf32> -> vector<8x32x1xf32>
    "tpu.trace_stop"() : () -> ()
    %c0_15 = arith.constant 0 : index
    %c0_16 = arith.constant 0 : index
    %c0_17 = arith.constant 0 : index
    %14 = vector.load %arg5[%c0_15, %c0_16, %c0_17] : memref<1x32x1xf32, #tpu.memory_space<vmem>>, vector<1x32x1xf32>
    %15 = vector.broadcast %14 : vector<1x32x1xf32> to vector<8x32x1xf32>
    %16 = arith.addf %13, %15 : vector<8x32x1xf32>
    %17 = arith.negf %16 : vector<8x32x1xf32>
    %18 = math.exp %17 : vector<8x32x1xf32>
    %cst_18 = arith.constant 1.000000e+00 : f32
    %19 = vector.broadcast %cst_18 : f32 to vector<8x32x1xf32>
    %20 = arith.addf %19, %18 : vector<8x32x1xf32>
    %21 = arith.divf %19, %20 : vector<8x32x1xf32>
    %22 = vector.broadcast %21 : vector<8x32x1xf32> to vector<8x32x256xf32>
    %23 = arith.mulf %0, %22 : vector<8x32x256xf32>
    %c0_19 = arith.constant 0 : index
    %c0_20 = arith.constant 0 : index
    %c0_21 = arith.constant 0 : index
    %24 = vector.load %arg6[%c0_19, %c0_20, %c0_21] : memref<8x32x256xf32, #tpu.memory_space<vmem>>, vector<8x32x256xf32>
    tpu.vector_store %arg6[%c0_19, %c0_20, %c0_21], %23 {strides = array<i32>} : memref<8x32x256xf32, #tpu.memory_space<vmem>>, vector<8x32x256xf32>,
    return
  }
  func.func @transform_0(%arg0: i32) -> (i32, i32, i32) {
    %c0_i32 = arith.constant 0 : i32
    %c0_i32_0 = arith.constant 0 : i32
    %c0_i32_1 = arith.constant 0 : i32
    return %arg0, %c0_i32, %c0_i32_0 : i32, i32, i32
  }
  func.func @transform_1(%arg0: i32) -> (i32, i32, i32) {
    %c0_i32 = arith.constant 0 : i32
    %c0_i32_0 = arith.constant 0 : i32
    %c0_i32_1 = arith.constant 0 : i32
    %c0_i32_2 = arith.constant 0 : i32
    return %c0_i32, %c0_i32_0, %c0_i32_1 : i32, i32, i32
  }
  func.func @transform_2(%arg0: i32) -> (i32, i32, i32) {
    %c0_i32 = arith.constant 0 : i32
    %c0_i32_0 = arith.constant 0 : i32
    %c0_i32_1 = arith.constant 0 : i32
    %c0_i32_2 = arith.constant 0 : i32
    return %c0_i32, %c0_i32_0, %c0_i32_1 : i32, i32, i32
  }
  func.func @transform_3(%arg0: i32) -> (i32, i32, i32) {
    %c0_i32 = arith.constant 0 : i32
    %c0_i32_0 = arith.constant 0 : i32
    %c0_i32_1 = arith.constant 0 : i32
    %c0_i32_2 = arith.constant 0 : i32
    return %c0_i32, %c0_i32_0, %c0_i32_1 : i32, i32, i32
  }
  func.func @transform_4(%arg0: i32) -> (i32, i32, i32) {
    %c0_i32 = arith.constant 0 : i32
    %c0_i32_0 = arith.constant 0 : i32
    %c0_i32_1 = arith.constant 0 : i32
    %c0_i32_2 = arith.constant 0 : i32
    return %c0_i32, %c0_i32_0, %c0_i32_1 : i32, i32, i32
  }
  func.func @transform_5(%arg0: i32) -> (i32, i32, i32) {
    %c0_i32 = arith.constant 0 : i32
    %c0_i32_0 = arith.constant 0 : i32
    %c0_i32_1 = arith.constant 0 : i32
    return %arg0, %c0_i32, %c0_i32_0 : i32, i32, i32
  }
}

</mosaic_0001>

<llo_original>
// kernel: tpu_custom_call.1
$region0: #{tpu_custom_call.1}
  #allocation0 [shape = 'u32[]', space=smem, size = 0x4, offset = 0x4, fixed_abs, tag = 'smem constant byte address 0x4 - core index']
  #allocation1 [shape = 'u32[144,128]{1,0:T(1,128)}', space=vmem, size = 0x12000, scoped, tag = 'internal scratch']
  %s0 = inlined_call_operand.hbm [shape: f32[8,32,256], index: 0, kind: input, shape index: {}]
  %s1 = inlined_call_operand.vmem [shape: f32[8,8,32], index: 1, kind: input, shape index: {}]
  %s2 = inlined_call_operand.vmem [shape: f32[1,8,1], index: 2, kind: input, shape index: {}]
  %s3 = inlined_call_operand.vmem [shape: f32[8,32,8], index: 3, kind: input, shape index: {}]
  %s4 = inlined_call_operand.vmem [shape: f32[1,32,1], index: 4, kind: input, shape index: {}]
  %s5 = inlined_call_operand.hbm [shape: f32[8,32,256], index: 5, kind: output, shape index: {}]
  %s6 = sld [smem:[#allocation0]]
  $region34: #{tpu_custom_call.1} parent=0
    _
  %s8 = ssub.s32 1, %s6
  %s9 = scalar_select 0, %s8, %s6
  $region1: #{tpu_custom_call.1} parent=0
    #allocation2 [shape = 'u8[262144]{0}', space=vmem, size = 0x40000, scoped, tag = 'input window, operand 0, single buffered']
    #allocation3 [shape = 's32[1]{0}', space=sflag, size = 0x4, scoped, tag = 'scoped memory for tpu_custom_call.1']
    #allocation4 [shape = 's32[1]{0}', space=sflag, size = 0x4, scoped, tag = 'scoped memory for tpu_custom_call.1']
    #allocation5 [shape = 'u8[262144]{0}', space=vmem, size = 0x40000, scoped, tag = 'output window, operand 0, single buffered']
    %10 = vsyncpa [#allocation3], 0
    %11 = vsyncpa [#allocation4], 0
    // Predicated region
    $region2: #{tpu_custom_call.1} parent=1 // pred_check
      _
    $region3: #{tpu_custom_call.1} parent=1 // pred_check_branch
      %13 = sbr.rel (0) target = $region5
    $region4: #{tpu_custom_call.1} parent=1 // pred_region
      %s15 = ssub.s32 8192, 8192
      %16 = vsyncadd [#allocation3], %s15
      %s17 = sshll.u32 [#allocation2], 4
      %s18 = int_to_ptr.vmem [resolvable:$true] %s17
      %23 = dma.hbm_to_vmem [thread:$0]  %s0, 8192, %s18, [#allocation3], 256, 256, 16
    $region5: #{tpu_custom_call.1} parent=1 // pred_fallthru
      _
    // Predicated region
    $region6: #{tpu_custom_call.1} parent=1 // pred_check
      _
    $region7: #{tpu_custom_call.1} parent=1 // pred_check_branch
      %25 = sbr.rel (0) target = $region9
    $region8: #{tpu_custom_call.1} parent=1 // pred_region
      _
    $region9: #{tpu_custom_call.1} parent=1 // pred_fallthru
      _
    // Predicated region
    $region10: #{tpu_custom_call.1} parent=1 // pred_check
      _
    $region11: #{tpu_custom_call.1} parent=1 // pred_check_branch
      %27 = sbr.rel (0) target = $region13
    $region12: #{tpu_custom_call.1} parent=1 // pred_region
      _
    $region13: #{tpu_custom_call.1} parent=1 // pred_fallthru
      _
    // Predicated region
    $region14: #{tpu_custom_call.1} parent=1 // pred_check
      _
    $region15: #{tpu_custom_call.1} parent=1 // pred_check_branch
      %29 = sbr.rel (0) target = $region17
    $region16: #{tpu_custom_call.1} parent=1 // pred_region
      _
    $region17: #{tpu_custom_call.1} parent=1 // pred_fallthru
      _
    // Predicated region
    $region18: #{tpu_custom_call.1} parent=1 // pred_check
      _
    $region19: #{tpu_custom_call.1} parent=1 // pred_check_branch
      %31 = sbr.rel (0) target = $region21
    $region20: #{tpu_custom_call.1} parent=1 // pred_region
      _
    $region21: #{tpu_custom_call.1} parent=1 // pred_fallthru
      _
    // Predicated region
    $region22: #{tpu_custom_call.1} parent=1 // pred_check
      _
    $region23: #{tpu_custom_call.1} parent=1 // pred_check_branch
      %33 = sbr.rel (0) target = $region25
    $region24: #{tpu_custom_call.1} parent=1 // pred_region
      %34 = dma.done [#allocation3], 8192
    $region25: #{tpu_custom_call.1} parent=1 // pred_fallthru
      _
    %v35 = vld [vmem:[#allocation2] sm:$0xff]
    %v36 = vld [vmem:[#allocation2 + $0x8] sm:$0xff]
    %v37 = vld [vmem:[#allocation2 + $0x10] sm:$0xff]
    %v38 = vld [vmem:[#allocation2 + $0x18] sm:$0xff]
    %v39 = vld [vmem:[#allocation2 + $0x20] sm:$0xff]
    %v40 = vld [vmem:[#allocation2 + $0x28] sm:$0xff]
    %v41 = vld [vmem:[#allocation2 + $0x30] sm:$0xff]
    %v42 = vld [vmem:[#allocation2 + $0x38] sm:$0xff]
    %v43 = vld [vmem:[#allocation2 + $0x40] sm:$0xff]
    %v44 = vld [vmem:[#allocation2 + $0x48] sm:$0xff]
    %v45 = vld [vmem:[#allocation2 + $0x50] sm:$0xff]
    %v46 = vld [vmem:[#allocation2 + $0x58] sm:$0xff]
    %v47 = vld [vmem:[#allocation2 + $0x60] sm:$0xff]
    %v48 = vld [vmem:[#allocation2 + $0x68] sm:$0xff]
    %v49 = vld [vmem:[#allocation2 + $0x70] sm:$0xff]
    %v50 = vld [vmem:[#allocation2 + $0x78] sm:$0xff]
    %v51 = vld [vmem:[#allocation2 + $0x80] sm:$0xff]
    %v52 = vld [vmem:[#allocation2 + $0x88] sm:$0xff]
    %v53 = vld [vmem:[#allocation2 + $0x90] sm:$0xff]
    %v54 = vld [vmem:[#allocation2 + $0x98] sm:$0xff]
    %v55 = vld [vmem:[#allocation2 + $0xa0] sm:$0xff]
    %v56 = vld [vmem:[#allocation2 + $0xa8] sm:$0xff]
    %v57 = vld [vmem:[#allocation2 + $0xb0] sm:$0xff]
    %v58 = vld [vmem:[#allocation2 + $0xb8] sm:$0xff]
    %v59 = vld [vmem:[#allocation2 + $0xc0] sm:$0xff]
    %v60 = vld [vmem:[#allocation2 + $0xc8] sm:$0xff]
    %v61 = vld [vmem:[#allocation2 + $0xd0] sm:$0xff]
    %v62 = vld [vmem:[#allocation2 + $0xd8] sm:$0xff]
    %v63 = vld [vmem:[#allocation2 + $0xe0] sm:$0xff]
    %v64 = vld [vmem:[#allocation2 + $0xe8] sm:$0xff]
    %v65 = vld [vmem:[#allocation2 + $0xf0] sm:$0xff]
    %v66 = vld [vmem:[#allocation2 + $0xf8] sm:$0xff]
    %v67 = vld [vmem:[#allocation2 + $0x100] sm:$0xff]
    %v68 = vld [vmem:[#allocation2 + $0x108] sm:$0xff]
    %v69 = vld [vmem:[#allocation2 + $0x110] sm:$0xff]
    %v70 = vld [vmem:[#allocation2 + $0x118] sm:$0xff]
    %v71 = vld [vmem:[#allocation2 + $0x120] sm:$0xff]
    %v72 = vld [vmem:[#allocation2 + $0x128] sm:$0xff]
    %v73 = vld [vmem:[#allocation2 + $0x130] sm:$0xff]
    %v74 = vld [vmem:[#allocation2 + $0x138] sm:$0xff]
    %v75 = vld [vmem:[#allocation2 + $0x140] sm:$0xff]
    %v76 = vld [vmem:[#allocation2 + $0x148] sm:$0xff]
    %v77 = vld [vmem:[#allocation2 + $0x150] sm:$0xff]
    %v78 = vld [vmem:[#allocation2 + $0x158] sm:$0xff]
    %v79 = vld [vmem:[#allocation2 + $0x160] sm:$0xff]
    %v80 = vld [vmem:[#allocation2 + $0x168] sm:$0xff]
    %v81 = vld [vmem:[#allocation2 + $0x170] sm:$0xff]
    %v82 = vld [vmem:[#allocation2 + $0x178] sm:$0xff]
    %v83 = vld [vmem:[#allocation2 + $0x180] sm:$0xff]
    %v84 = vld [vmem:[#allocation2 + $0x188] sm:$0xff]
    %v85 = vld [vmem:[#allocation2 + $0x190] sm:$0xff]
    %v86 = vld [vmem:[#allocation2 + $0x198] sm:$0xff]
    %v87 = vld [vmem:[#allocation2 + $0x1a0] sm:$0xff]
    %v88 = vld [vmem:[#allocation2 + $0x1a8] sm:$0xff]
    %v89 = vld [vmem:[#allocation2 + $0x1b0] sm:$0xff]
    %v90 = vld [vmem:[#allocation2 + $0x1b8] sm:$0xff]
    %v91 = vld [vmem:[#allocation2 + $0x1c0] sm:$0xff]
    %v92 = vld [vmem:[#allocation2 + $0x1c8] sm:$0xff]
    %v93 = vld [vmem:[#allocation2 + $0x1d0] sm:$0xff]
    %v94 = vld [vmem:[#allocation2 + $0x1d8] sm:$0xff]
    %v95 = vld [vmem:[#allocation2 + $0x1e0] sm:$0xff]
    %v96 = vld [vmem:[#allocation2 + $0x1e8] sm:$0xff]
    %v97 = vld [vmem:[#allocation2 + $0x1f0] sm:$0xff]
    %v98 = vld [vmem:[#allocation2 + $0x1f8] sm:$0xff]
    %v99 = vadd.f32 %v35, %v36
    %100 = vadd.xlane.f32.xlu0 %v99
    %v101 = vpop.xlane.xlu0 %100
    %v102 = vadd.f32 %v37, %v38
    %103 = vadd.xlane.f32.xlu0 %v102
    %v104 = vpop.xlane.xlu0 %103
    %v105 = vadd.f32 %v39, %v40
    %106 = vadd.xlane.f32.xlu0 %v105
    %v107 = vpop.xlane.xlu0 %106
    %v108 = vadd.f32 %v41, %v42
    %109 = vadd.xlane.f32.xlu0 %v108
    %v110 = vpop.xlane.xlu0 %109
    %v111 = vadd.f32 %v43, %v44
    %112 = vadd.xlane.f32.xlu0 %v111
    %v113 = vpop.xlane.xlu0 %112
    %v114 = vadd.f32 %v45, %v46
    %115 = vadd.xlane.f32.xlu0 %v114
    %v116 = vpop.xlane.xlu0 %115
    %v117 = vadd.f32 %v47, %v48
    %118 = vadd.xlane.f32.xlu0 %v117
    %v119 = vpop.xlane.xlu0 %118
    %v120 = vadd.f32 %v49, %v50
    %121 = vadd.xlane.f32.xlu0 %v120
    %v122 = vpop.xlane.xlu0 %121
    %v123 = vadd.f32 %v51, %v52
    %124 = vadd.xlane.f32.xlu0 %v123
    %v125 = vpop.xlane.xlu0 %124
    %v126 = vadd.f32 %v53, %v54
    %127 = vadd.xlane.f32.xlu0 %v126
    %v128 = vpop.xlane.xlu0 %127
    %v129 = vadd.f32 %v55, %v56
    %130 = vadd.xlane.f32.xlu0 %v129
    %v131 = vpop.xlane.xlu0 %130
    %v132 = vadd.f32 %v57, %v58
    %133 = vadd.xlane.f32.xlu0 %v132
    %v134 = vpop.xlane.xlu0 %133
    %v135 = vadd.f32 %v59, %v60
    %136 = vadd.xlane.f32.xlu0 %v135
    %v137 = vpop.xlane.xlu0 %136
    %v138 = vadd.f32 %v61, %v62
    %139 = vadd.xlane.f32.xlu0 %v138
    %v140 = vpop.xlane.xlu0 %139
    %v141 = vadd.f32 %v63, %v64
    %142 = vadd.xlane.f32.xlu0 %v141
    %v143 = vpop.xlane.xlu0 %142
    %v144 = vadd.f32 %v65, %v66
    %145 = vadd.xlane.f32.xlu0 %v144
    %v146 = vpop.xlane.xlu0 %145
    %v147 = vadd.f32 %v67, %v68
    %148 = vadd.xlane.f32.xlu0 %v147
    %v149 = vpop.xlane.xlu0 %148
    %v150 = vadd.f32 %v69, %v70
    %151 = vadd.xlane.f32.xlu0 %v150
    %v152 = vpop.xlane.xlu0 %151
    %v153 = vadd.f32 %v71, %v72
    %154 = vadd.xlane.f32.xlu0 %v153
    %v155 = vpop.xlane.xlu0 %154
    %v156 = vadd.f32 %v73, %v74
    %157 = vadd.xlane.f32.xlu0 %v156
    %v158 = vpop.xlane.xlu0 %157
    %v159 = vadd.f32 %v75, %v76
    %160 = vadd.xlane.f32.xlu0 %v159
    %v161 = vpop.xlane.xlu0 %160
    %v162 = vadd.f32 %v77, %v78
    %163 = vadd.xlane.f32.xlu0 %v162
    %v164 = vpop.xlane.xlu0 %163
    %v165 = vadd.f32 %v79, %v80
    %166 = vadd.xlane.f32.xlu0 %v165
    %v167 = vpop.xlane.xlu0 %166
    %v168 = vadd.f32 %v81, %v82
    %169 = vadd.xlane.f32.xlu0 %v168
    %v170 = vpop.xlane.xlu0 %169
    %v171 = vadd.f32 %v83, %v84
    %172 = vadd.xlane.f32.xlu0 %v171
    %v173 = vpop.xlane.xlu0 %172
    %v174 = vadd.f32 %v85, %v86
    %175 = vadd.xlane.f32.xlu0 %v174
    %v176 = vpop.xlane.xlu0 %175
    %v177 = vadd.f32 %v87, %v88
    %178 = vadd.xlane.f32.xlu0 %v177
    %v179 = vpop.xlane.xlu0 %178
    %v180 = vadd.f32 %v89, %v90
    %181 = vadd.xlane.f32.xlu0 %v180
    %v182 = vpop.xlane.xlu0 %181
    %v183 = vadd.f32 %v91, %v92
    %184 = vadd.xlane.f32.xlu0 %v183
    %v185 = vpop.xlane.xlu0 %184
    %v186 = vadd.f32 %v93, %v94
    %187 = vadd.xlane.f32.xlu0 %v186
    %v188 = vpop.xlane.xlu0 %187
    %v189 = vadd.f32 %v95, %v96
    %190 = vadd.xlane.f32.xlu0 %v189
    %v191 = vpop.xlane.xlu0 %190
    %v192 = vadd.f32 %v97, %v98
    %193 = vadd.xlane.f32.xlu0 %v192
    %v194 = vpop.xlane.xlu0 %193
    %v195 = vmul.f32 %v101, 0.00390625
    %v196 = vmul.f32 %v104, 0.00390625
    %v197 = vmul.f32 %v107, 0.00390625
    %v198 = vmul.f32 %v110, 0.00390625
    %v199 = vmul.f32 %v113, 0.00390625
    %v200 = vmul.f32 %v116, 0.00390625
    %v201 = vmul.f32 %v119, 0.00390625
    %v202 = vmul.f32 %v122, 0.00390625
    %v203 = vmul.f32 %v125, 0.00390625
    %v204 = vmul.f32 %v128, 0.00390625
    %v205 = vmul.f32 %v131, 0.00390625
    %v206 = vmul.f32 %v134, 0.00390625
    %v207 = vmul.f32 %v137, 0.00390625
    %v208 = vmul.f32 %v140, 0.00390625
    %v209 = vmul.f32 %v143, 0.00390625
    %v210 = vmul.f32 %v146, 0.00390625
    %v211 = vmul.f32 %v149, 0.00390625
    %v212 = vmul.f32 %v152, 0.00390625
    %v213 = vmul.f32 %v155, 0.00390625
    %v214 = vmul.f32 %v158, 0.00390625
    %v215 = vmul.f32 %v161, 0.00390625
    %v216 = vmul.f32 %v164, 0.00390625
    %v217 = vmul.f32 %v167, 0.00390625
    %v218 = vmul.f32 %v170, 0.00390625
    %v219 = vmul.f32 %v173, 0.00390625
    %v220 = vmul.f32 %v176, 0.00390625
    %v221 = vmul.f32 %v179, 0.00390625
    %v222 = vmul.f32 %v182, 0.00390625
    %v223 = vmul.f32 %v185, 0.00390625
    %v224 = vmul.f32 %v188, 0.00390625
    %v225 = vmul.f32 %v191, 0.00390625
    %v226 = vmul.f32 %v194, 0.00390625
    %v227 = vld [vmem:[%s1] sm:$0xff]
    %v228 = vld [vmem:[%s1 + $0x8] sm:$0xff]
    %v229 = vld [vmem:[%s1 + $0x10] sm:$0xff]
    %v230 = vld [vmem:[%s1 + $0x18] sm:$0xff]
    %v231 = vld [vmem:[%s1 + $0x20] sm:$0xff]
    %v232 = vld [vmem:[%s1 + $0x28] sm:$0xff]
    %v233 = vld [vmem:[%s1 + $0x30] sm:$0xff]
    %v234 = vld [vmem:[%s1 + $0x38] sm:$0xff]
    %v235 = vld [vmem:[%s2] sm:$0xff]
    %vm236 = vcmask 261120
    %v238 = vsel %vm236, %v227, 0
    %240 = vmatprep.subr.mxu0 0.0
    %241 = vmatpush1.msra.mxu0 0.0
    %242 = vmatprep.subr.mxu0 0.0
    %243 = vmatpush1.msra.mxu0 0.0
    %244 = vmatprep.subr.mxu0 0.0
    %245 = vmatpush1.msra.mxu0 0.0
    %246 = vmatprep.subr.mxu0 0.0
    %247 = vmatpush1.msra.mxu0 0.0
    %248 = vmatprep.subr.mxu0 0.0
    %249 = vmatpush1.msra.mxu0 0.0
    %250 = vmatprep.subr.mxu0 0.0
    %251 = vmatpush1.msra.mxu0 0.0
    %252 = vmatprep.subr.mxu0 0.0
    %253 = vmatpush1.msra.mxu0 0.0
    %254 = vmatprep.subr.mxu0 0.0
    %255 = vmatpush1.msra.mxu0 0.0
    %256 = vmatprep.subr.mxu0 0.0
    %257 = vmatpush1.msra.mxu0 0.0
    %258 = vmatprep.subr.mxu0 0.0
    %259 = vmatpush1.msra.mxu0 0.0
    %260 = vmatprep.subr.mxu0 0.0
    %261 = vmatpush1.msra.mxu0 0.0
    %262 = vmatprep.subr.mxu0 0.0
    %263 = vmatpush1.msra.mxu0 0.0
    %264 = vmatprep.subr.mxu0 0.0
    %265 = vmatpush1.msra.mxu0 %v198
    %266 = vmatprep.subr.mxu0 0.0
    %267 = vmatpush1.msra.mxu0 %v197
    %268 = vmatprep.subr.mxu0 0.0
    %269 = vmatpush1.msra.mxu0 %v196
    %270 = vmatprep.subr.mxu0 0.0
    %271 = vmatpush1.msra.mxu0 %v195
    %272 = vmatprep.subr.mxu0 0.0
    %273 = vmatpush2.msra.mxu0 0.0
    %274 = vmatprep.subr.mxu0 0.0
    %275 = vmatpush2.msra.mxu0 0.0
    %276 = vmatprep.subr.mxu0 0.0
    %277 = vmatpush2.msra.mxu0 0.0
    %278 = vmatprep.subr.mxu0 0.0
    %279 = vmatpush2.msra.mxu0 0.0
    %280 = vmatprep.subr.mxu0 0.0
    %281 = vmatpush2.msra.mxu0 0.0
    %282 = vmatprep.subr.mxu0 0.0
    %283 = vmatpush2.msra.mxu0 0.0
    %284 = vmatprep.subr.mxu0 0.0
    %285 = vmatpush2.msra.mxu0 0.0
    %286 = vmatprep.subr.mxu0 0.0
    %287 = vmatpush2.msra.mxu0 0.0
    %288 = vmatprep.subr.mxu0 0.0
    %289 = vmatpush2.msra.mxu0 0.0
    %290 = vmatprep.subr.mxu0 0.0
    %291 = vmatpush2.msra.mxu0 0.0
    %292 = vmatprep.subr.mxu0 0.0
    %293 = vmatpush2.msra.mxu0 0.0
    %294 = vmatprep.subr.mxu0 0.0
    %295 = vmatpush2.msra.mxu0 0.0
    %296 = vmatprep.subr.mxu0 0.0
    %297 = vmatpush2.msra.mxu0 0.0
    %298 = vmatprep.subr.mxu0 0.0
    %299 = vmatpush2.msra.mxu0 0.0
    %300 = vmatprep.subr.mxu0 0.0
    %301 = vmatpush2.msra.mxu0 0.0
    %302 = vmatprep.subr.mxu0 0.0
    %303 = vmatpush2.msra.mxu0 0.0
    %304 = vmatprep.mubr.f32.mxu0 0.0
    %305 = vmatmul.mubr.f32.gmra.mxu0 %v238
    %v306 = vpop.f32.mrf.mxu0
    %v307 = vadd.f32 %v235, %v306
    %v308 = vpop.f32.mrf.mxu0
    %309 = vdwg.mxu0
    %v311 = vsel %vm236, %v228, 0
    %313 = vmatprep.subr.mxu0 0.0
    %314 = vmatpush1.msra.mxu0 0.0
    %315 = vmatprep.subr.mxu0 0.0
    %316 = vmatpush1.msra.mxu0 0.0
    %317 = vmatprep.subr.mxu0 0.0
    %318 = vmatpush1.msra.mxu0 0.0
    %319 = vmatprep.subr.mxu0 0.0
    %320 = vmatpush1.msra.mxu0 0.0
    %321 = vmatprep.subr.mxu0 0.0
    %322 = vmatpush1.msra.mxu0 0.0
    %323 = vmatprep.subr.mxu0 0.0
    %324 = vmatpush1.msra.mxu0 0.0
    %325 = vmatprep.subr.mxu0 0.0
    %326 = vmatpush1.msra.mxu0 0.0
    %327 = vmatprep.subr.mxu0 0.0
    %328 = vmatpush1.msra.mxu0 0.0
    %329 = vmatprep.subr.mxu0 0.0
    %330 = vmatpush1.msra.mxu0 0.0
    %331 = vmatprep.subr.mxu0 0.0
    %332 = vmatpush1.msra.mxu0 0.0
    %333 = vmatprep.subr.mxu0 0.0
    %334 = vmatpush1.msra.mxu0 0.0
    %335 = vmatprep.subr.mxu0 0.0
    %336 = vmatpush1.msra.mxu0 0.0
    %337 = vmatprep.subr.mxu0 0.0
    %338 = vmatpush1.msra.mxu0 %v202
    %339 = vmatprep.subr.mxu0 0.0
    %340 = vmatpush1.msra.mxu0 %v201
    %341 = vmatprep.subr.mxu0 0.0
    %342 = vmatpush1.msra.mxu0 %v200
    %343 = vmatprep.subr.mxu0 0.0
    %344 = vmatpush1.msra.mxu0 %v199
    %345 = vmatprep.subr.mxu0 0.0
    %346 = vmatpush2.msra.mxu0 0.0
    %347 = vmatprep.subr.mxu0 0.0
    %348 = vmatpush2.msra.mxu0 0.0
    %349 = vmatprep.subr.mxu0 0.0
    %350 = vmatpush2.msra.mxu0 0.0
    %351 = vmatprep.subr.mxu0 0.0
    %352 = vmatpush2.msra.mxu0 0.0
    %353 = vmatprep.subr.mxu0 0.0
    %354 = vmatpush2.msra.mxu0 0.0
    %355 = vmatprep.subr.mxu0 0.0
    %356 = vmatpush2.msra.mxu0 0.0
    %357 = vmatprep.subr.mxu0 0.0
    %358 = vmatpush2.msra.mxu0 0.0
    %359 = vmatprep.subr.mxu0 0.0
    %360 = vmatpush2.msra.mxu0 0.0
    %361 = vmatprep.subr.mxu0 0.0
    %362 = vmatpush2.msra.mxu0 0.0
    %363 = vmatprep.subr.mxu0 0.0
    %364 = vmatpush2.msra.mxu0 0.0
    %365 = vmatprep.subr.mxu0 0.0
    %366 = vmatpush2.msra.mxu0 0.0
    %367 = vmatprep.subr.mxu0 0.0
    %368 = vmatpush2.msra.mxu0 0.0
    %369 = vmatprep.subr.mxu0 0.0
    %370 = vmatpush2.msra.mxu0 0.0
    %371 = vmatprep.subr.mxu0 0.0
    %372 = vmatpush2.msra.mxu0 0.0
    %373 = vmatprep.subr.mxu0 0.0
    %374 = vmatpush2.msra.mxu0 0.0
    %375 = vmatprep.subr.mxu0 0.0
    %376 = vmatpush2.msra.mxu0 0.0
    %377 = vmatprep.mubr.f32.mxu0 0.0
    %378 = vmatmul.mubr.f32.gmra.mxu0 %v311
    %v379 = vpop.f32.mrf.mxu0
    %v380 = vadd.f32 %v235, %v379
    %v381 = vpop.f32.mrf.mxu0
    %382 = vdwg.mxu0
    %v384 = vsel %vm236, %v229, 0
    %386 = vmatprep.subr.mxu0 0.0
    %387 = vmatpush1.msra.mxu0 0.0
    %388 = vmatprep.subr.mxu0 0.0
    %389 = vmatpush1.msra.mxu0 0.0
    %390 = vmatprep.subr.mxu0 0.0
    %391 = vmatpush1.msra.mxu0 0.0
    %392 = vmatprep.subr.mxu0 0.0
    %393 = vmatpush1.msra.mxu0 0.0
    %394 = vmatprep.subr.mxu0 0.0
    %395 = vmatpush1.msra.mxu0 0.0
    %396 = vmatprep.subr.mxu0 0.0
    %397 = vmatpush1.msra.mxu0 0.0
    %398 = vmatprep.subr.mxu0 0.0
    %399 = vmatpush1.msra.mxu0 0.0
    %400 = vmatprep.subr.mxu0 0.0
    %401 = vmatpush1.msra.mxu0 0.0
    %402 = vmatprep.subr.mxu0 0.0
    %403 = vmatpush1.msra.mxu0 0.0
    %404 = vmatprep.subr.mxu0 0.0
    %405 = vmatpush1.msra.mxu0 0.0
    %406 = vmatprep.subr.mxu0 0.0
    %407 = vmatpush1.msra.mxu0 0.0
    %408 = vmatprep.subr.mxu0 0.0
    %409 = vmatpush1.msra.mxu0 0.0
    %410 = vmatprep.subr.mxu0 0.0
    %411 = vmatpush1.msra.mxu0 %v206
    %412 = vmatprep.subr.mxu0 0.0
    %413 = vmatpush1.msra.mxu0 %v205
    %414 = vmatprep.subr.mxu0 0.0
    %415 = vmatpush1.msra.mxu0 %v204
    %416 = vmatprep.subr.mxu0 0.0
    %417 = vmatpush1.msra.mxu0 %v203
    %418 = vmatprep.subr.mxu0 0.0
    %419 = vmatpush2.msra.mxu0 0.0
    %420 = vmatprep.subr.mxu0 0.0
    %421 = vmatpush2.msra.mxu0 0.0
    %422 = vmatprep.subr.mxu0 0.0
    %423 = vmatpush2.msra.mxu0 0.0
    %424 = vmatprep.subr.mxu0 0.0
    %425 = vmatpush2.msra.mxu0 0.0
    %426 = vmatprep.subr.mxu0 0.0
    %427 = vmatpush2.msra.mxu0 0.0
    %428 = vmatprep.subr.mxu0 0.0
    %429 = vmatpush2.msra.mxu0 0.0
    %430 = vmatprep.subr.mxu0 0.0
    %431 = vmatpush2.msra.mxu0 0.0
    %432 = vmatprep.subr.mxu0 0.0
    %433 = vmatpush2.msra.mxu0 0.0
    %434 = vmatprep.subr.mxu0 0.0
    %435 = vmatpush2.msra.mxu0 0.0
    %436 = vmatprep.subr.mxu0 0.0
    %437 = vmatpush2.msra.mxu0 0.0
    %438 = vmatprep.subr.mxu0 0.0
    %439 = vmatpush2.msra.mxu0 0.0
    %440 = vmatprep.subr.mxu0 0.0
    %441 = vmatpush2.msra.mxu0 0.0
    %442 = vmatprep.subr.mxu0 0.0
    %443 = vmatpush2.msra.mxu0 0.0
    %444 = vmatprep.subr.mxu0 0.0
    %445 = vmatpush2.msra.mxu0 0.0
    %446 = vmatprep.subr.mxu0 0.0
    %447 = vmatpush2.msra.mxu0 0.0
    %448 = vmatprep.subr.mxu0 0.0
    %449 = vmatpush2.msra.mxu0 0.0
    %450 = vmatprep.mubr.f32.mxu0 0.0
    %451 = vmatmul.mubr.f32.gmra.mxu0 %v384
    %v452 = vpop.f32.mrf.mxu0
    %v453 = vadd.f32 %v235, %v452
    %v454 = vpop.f32.mrf.mxu0
    %455 = vdwg.mxu0
    %v457 = vsel %vm236, %v230, 0
    %459 = vmatprep.subr.mxu0 0.0
    %460 = vmatpush1.msra.mxu0 0.0
    %461 = vmatprep.subr.mxu0 0.0
    %462 = vmatpush1.msra.mxu0 0.0
    %463 = vmatprep.subr.mxu0 0.0
    %464 = vmatpush1.msra.mxu0 0.0
    %465 = vmatprep.subr.mxu0 0.0
    %466 = vmatpush1.msra.mxu0 0.0
    %467 = vmatprep.subr.mxu0 0.0
    %468 = vmatpush1.msra.mxu0 0.0
    %469 = vmatprep.subr.mxu0 0.0
    %470 = vmatpush1.msra.mxu0 0.0
    %471 = vmatprep.subr.mxu0 0.0
    %472 = vmatpush1.msra.mxu0 0.0
    %473 = vmatprep.subr.mxu0 0.0
    %474 = vmatpush1.msra.mxu0 0.0
    %475 = vmatprep.subr.mxu0 0.0
    %476 = vmatpush1.msra.mxu0 0.0
    %477 = vmatprep.subr.mxu0 0.0
    %478 = vmatpush1.msra.mxu0 0.0
    %479 = vmatprep.subr.mxu0 0.0
    %480 = vmatpush1.msra.mxu0 0.0
    %481 = vmatprep.subr.mxu0 0.0
    %482 = vmatpush1.msra.mxu0 0.0
    %483 = vmatprep.subr.mxu0 0.0
    %484 = vmatpush1.msra.mxu0 %v210
    %485 = vmatprep.subr.mxu0 0.0
    %486 = vmatpush1.msra.mxu0 %v209
    %487 = vmatprep.subr.mxu0 0.0
    %488 = vmatpush1.msra.mxu0 %v208
    %489 = vmatprep.subr.mxu0 0.0
    %490 = vmatpush1.msra.mxu0 %v207
    %491 = vmatprep.subr.mxu0 0.0
    %492 = vmatpush2.msra.mxu0 0.0
    %493 = vmatprep.subr.mxu0 0.0
    %494 = vmatpush2.msra.mxu0 0.0
    %495 = vmatprep.subr.mxu0 0.0
    %496 = vmatpush2.msra.mxu0 0.0
    %497 = vmatprep.subr.mxu0 0.0
    %498 = vmatpush2.msra.mxu0 0.0
    %499 = vmatprep.subr.mxu0 0.0
    %500 = vmatpush2.msra.mxu0 0.0
    %501 = vmatprep.subr.mxu0 0.0
    %502 = vmatpush2.msra.mxu0 0.0
    %503 = vmatprep.subr.mxu0 0.0
    %504 = vmatpush2.msra.mxu0 0.0
    %505 = vmatprep.subr.mxu0 0.0
    %506 = vmatpush2.msra.mxu0 0.0
    %507 = vmatprep.subr.mxu0 0.0
    %508 = vmatpush2.msra.mxu0 0.0
    %509 = vmatprep.subr.mxu0 0.0
    %510 = vmatpush2.msra.mxu0 0.0
    %511 = vmatprep.subr.mxu0 0.0
    %512 = vmatpush2.msra.mxu0 0.0
    %513 = vmatprep.subr.mxu0 0.0
    %514 = vmatpush2.msra.mxu0 0.0
    %515 = vmatprep.subr.mxu0 0.0
    %516 = vmatpush2.msra.mxu0 0.0
    %517 = vmatprep.subr.mxu0 0.0
    %518 = vmatpush2.msra.mxu0 0.0
    %519 = vmatprep.subr.mxu0 0.0
    %520 = vmatpush2.msra.mxu0 0.0
    %521 = vmatprep.subr.mxu0 0.0
    %522 = vmatpush2.msra.mxu0 0.0
    %523 = vmatprep.mubr.f32.mxu0 0.0
    %524 = vmatmul.mubr.f32.gmra.mxu0 %v457
    %v525 = vpop.f32.mrf.mxu0
    %v526 = vadd.f32 %v235, %v525
    %v527 = vpop.f32.mrf.mxu0
    %528 = vdwg.mxu0
    %v530 = vsel %vm236, %v231, 0
    %532 = vmatprep.subr.mxu0 0.0
    %533 = vmatpush1.msra.mxu0 0.0
    %534 = vmatprep.subr.mxu0 0.0
    %535 = vmatpush1.msra.mxu0 0.0
    %536 = vmatprep.subr.mxu0 0.0
    %537 = vmatpush1.msra.mxu0 0.0
    %538 = vmatprep.subr.mxu0 0.0
    %539 = vmatpush1.msra.mxu0 0.0
    %540 = vmatprep.subr.mxu0 0.0
    %541 = vmatpush1.msra.mxu0 0.0
    %542 = vmatprep.subr.mxu0 0.0
    %543 = vmatpush1.msra.mxu0 0.0
    %544 = vmatprep.subr.mxu0 0.0
    %545 = vmatpush1.msra.mxu0 0.0
    %546 = vmatprep.subr.mxu0 0.0
    %547 = vmatpush1.msra.mxu0 0.0
    %548 = vmatprep.subr.mxu0 0.0
    %549 = vmatpush1.msra.mxu0 0.0
    %550 = vmatprep.subr.mxu0 0.0
    %551 = vmatpush1.msra.mxu0 0.0
    %552 = vmatprep.subr.mxu0 0.0
    %553 = vmatpush1.msra.mxu0 0.0
    %554 = vmatprep.subr.mxu0 0.0
    %555 = vmatpush1.msra.mxu0 0.0
    %556 = vmatprep.subr.mxu0 0.0
    %557 = vmatpush1.msra.mxu0 %v214
    %558 = vmatprep.subr.mxu0 0.0
    %559 = vmatpush1.msra.mxu0 %v213
    %560 = vmatprep.subr.mxu0 0.0
    %561 = vmatpush1.msra.mxu0 %v212
    %562 = vmatprep.subr.mxu0 0.0
    %563 = vmatpush1.msra.mxu0 %v211
    %564 = vmatprep.subr.mxu0 0.0
    %565 = vmatpush2.msra.mxu0 0.0
    %566 = vmatprep.subr.mxu0 0.0
    %567 = vmatpush2.msra.mxu0 0.0
    %568 = vmatprep.subr.mxu0 0.0
    %569 = vmatpush2.msra.mxu0 0.0
    %570 = vmatprep.subr.mxu0 0.0
    %571 = vmatpush2.msra.mxu0 0.0
    %572 = vmatprep.subr.mxu0 0.0
    %573 = vmatpush2.msra.mxu0 0.0
    %574 = vmatprep.subr.mxu0 0.0
    %575 = vmatpush2.msra.mxu0 0.0
    %576 = vmatprep.subr.mxu0 0.0
    %577 = vmatpush2.msra.mxu0 0.0
    %578 = vmatprep.subr.mxu0 0.0
    %579 = vmatpush2.msra.mxu0 0.0
    %580 = vmatprep.subr.mxu0 0.0
    %581 = vmatpush2.msra.mxu0 0.0
    %582 = vmatprep.subr.mxu0 0.0
    %583 = vmatpush2.msra.mxu0 0.0
    %584 = vmatprep.subr.mxu0 0.0
    %585 = vmatpush2.msra.mxu0 0.0
    %586 = vmatprep.subr.mxu0 0.0
    %587 = vmatpush2.msra.mxu0 0.0
    %588 = vmatprep.subr.mxu0 0.0
    %589 = vmatpush2.msra.mxu0 0.0
    %590 = vmatprep.subr.mxu0 0.0
    %591 = vmatpush2.msra.mxu0 0.0
    %592 = vmatprep.subr.mxu0 0.0
    %593 = vmatpush2.msra.mxu0 0.0
    %594 = vmatprep.subr.mxu0 0.0
    %595 = vmatpush2.msra.mxu0 0.0
    %596 = vmatprep.mubr.f32.mxu0 0.0
    %597 = vmatmul.mubr.f32.gmra.mxu0 %v530
    %v598 = vpop.f32.mrf.mxu0
    %v599 = vadd.f32 %v235, %v598
    %v600 = vpop.f32.mrf.mxu0
    %601 = vdwg.mxu0
    %v603 = vsel %vm236, %v232, 0
    %605 = vmatprep.subr.mxu0 0.0
    %606 = vmatpush1.msra.mxu0 0.0
    %607 = vmatprep.subr.mxu0 0.0
    %608 = vmatpush1.msra.mxu0 0.0
    %609 = vmatprep.subr.mxu0 0.0
    %610 = vmatpush1.msra.mxu0 0.0
    %611 = vmatprep.subr.mxu0 0.0
    %612 = vmatpush1.msra.mxu0 0.0
    %613 = vmatprep.subr.mxu0 0.0
    %614 = vmatpush1.msra.mxu0 0.0
    %615 = vmatprep.subr.mxu0 0.0
    %616 = vmatpush1.msra.mxu0 0.0
    %617 = vmatprep.subr.mxu0 0.0
    %618 = vmatpush1.msra.mxu0 0.0
    %619 = vmatprep.subr.mxu0 0.0
    %620 = vmatpush1.msra.mxu0 0.0
    %621 = vmatprep.subr.mxu0 0.0
    %622 = vmatpush1.msra.mxu0 0.0
    %623 = vmatprep.subr.mxu0 0.0
    %624 = vmatpush1.msra.mxu0 0.0
    %625 = vmatprep.subr.mxu0 0.0
    %626 = vmatpush1.msra.mxu0 0.0
    %627 = vmatprep.subr.mxu0 0.0
    %628 = vmatpush1.msra.mxu0 0.0
    %629 = vmatprep.subr.mxu0 0.0
    %630 = vmatpush1.msra.mxu0 %v218
    %631 = vmatprep.subr.mxu0 0.0
    %632 = vmatpush1.msra.mxu0 %v217
    %633 = vmatprep.subr.mxu0 0.0
    %634 = vmatpush1.msra.mxu0 %v216
    %635 = vmatprep.subr.mxu0 0.0
    %636 = vmatpush1.msra.mxu0 %v215
    %637 = vmatprep.subr.mxu0 0.0
    %638 = vmatpush2.msra.mxu0 0.0
    %639 = vmatprep.subr.mxu0 0.0
    %640 = vmatpush2.msra.mxu0 0.0
    %641 = vmatprep.subr.mxu0 0.0
    %642 = vmatpush2.msra.mxu0 0.0
    %643 = vmatprep.subr.mxu0 0.0
    %644 = vmatpush2.msra.mxu0 0.0
    %645 = vmatprep.subr.mxu0 0.0
    %646 = vmatpush2.msra.mxu0 0.0
    %647 = vmatprep.subr.mxu0 0.0
    %648 = vmatpush2.msra.mxu0 0.0
    %649 = vmatprep.subr.mxu0 0.0
    %650 = vmatpush2.msra.mxu0 0.0
    %651 = vmatprep.subr.mxu0 0.0
    %652 = vmatpush2.msra.mxu0 0.0
    %653 = vmatprep.subr.mxu0 0.0
    %654 = vmatpush2.msra.mxu0 0.0
    %655 = vmatprep.subr.mxu0 0.0
    %656 = vmatpush2.msra.mxu0 0.0
    %657 = vmatprep.subr.mxu0 0.0
    %658 = vmatpush2.msra.mxu0 0.0
    %659 = vmatprep.subr.mxu0 0.0
    %660 = vmatpush2.msra.mxu0 0.0
    %661 = vmatprep.subr.mxu0 0.0
    %662 = vmatpush2.msra.mxu0 0.0
    %663 = vmatprep.subr.mxu0 0.0
    %664 = vmatpush2.msra.mxu0 0.0
    %665 = vmatprep.subr.mxu0 0.0
    %666 = vmatpush2.msra.mxu0 0.0
    %667 = vmatprep.subr.mxu0 0.0
    %668 = vmatpush2.msra.mxu0 0.0
    %669 = vmatprep.mubr.f32.mxu0 0.0
    %670 = vmatmul.mubr.f32.gmra.mxu0 %v603
    %v671 = vpop.f32.mrf.mxu0
    %v672 = vadd.f32 %v235, %v671
    %v673 = vpop.f32.mrf.mxu0
    %674 = vdwg.mxu0
    %v676 = vsel %vm236, %v233, 0
    %678 = vmatprep.subr.mxu0 0.0
    %679 = vmatpush1.msra.mxu0 0.0
    %680 = vmatprep.subr.mxu0 0.0
    %681 = vmatpush1.msra.mxu0 0.0
    %682 = vmatprep.subr.mxu0 0.0
    %683 = vmatpush1.msra.mxu0 0.0
    %684 = vmatprep.subr.mxu0 0.0
    %685 = vmatpush1.msra.mxu0 0.0
    %686 = vmatprep.subr.mxu0 0.0
    %687 = vmatpush1.msra.mxu0 0.0
    %688 = vmatprep.subr.mxu0 0.0
    %689 = vmatpush1.msra.mxu0 0.0
    %690 = vmatprep.subr.mxu0 0.0
    %691 = vmatpush1.msra.mxu0 0.0
    %692 = vmatprep.subr.mxu0 0.0
    %693 = vmatpush1.msra.mxu0 0.0
    %694 = vmatprep.subr.mxu0 0.0
    %695 = vmatpush1.msra.mxu0 0.0
    %696 = vmatprep.subr.mxu0 0.0
    %697 = vmatpush1.msra.mxu0 0.0
    %698 = vmatprep.subr.mxu0 0.0
    %699 = vmatpush1.msra.mxu0 0.0
    %700 = vmatprep.subr.mxu0 0.0
    %701 = vmatpush1.msra.mxu0 0.0
    %702 = vmatprep.subr.mxu0 0.0
    %703 = vmatpush1.msra.mxu0 %v222
    %704 = vmatprep.subr.mxu0 0.0
    %705 = vmatpush1.msra.mxu0 %v221
    %706 = vmatprep.subr.mxu0 0.0
    %707 = vmatpush1.msra.mxu0 %v220
    %708 = vmatprep.subr.mxu0 0.0
    %709 = vmatpush1.msra.mxu0 %v219
    %710 = vmatprep.subr.mxu0 0.0
    %711 = vmatpush2.msra.mxu0 0.0
    %712 = vmatprep.subr.mxu0 0.0
    %713 = vmatpush2.msra.mxu0 0.0
    %714 = vmatprep.subr.mxu0 0.0
    %715 = vmatpush2.msra.mxu0 0.0
    %716 = vmatprep.subr.mxu0 0.0
    %717 = vmatpush2.msra.mxu0 0.0
    %718 = vmatprep.subr.mxu0 0.0
    %719 = vmatpush2.msra.mxu0 0.0
    %720 = vmatprep.subr.mxu0 0.0
    %721 = vmatpush2.msra.mxu0 0.0
    %722 = vmatprep.subr.mxu0 0.0
    %723 = vmatpush2.msra.mxu0 0.0
    %724 = vmatprep.subr.mxu0 0.0
    %725 = vmatpush2.msra.mxu0 0.0
    %726 = vmatprep.subr.mxu0 0.0
    %727 = vmatpush2.msra.mxu0 0.0
    %728 = vmatprep.subr.mxu0 0.0
    %729 = vmatpush2.msra.mxu0 0.0
    %730 = vmatprep.subr.mxu0 0.0
    %731 = vmatpush2.msra.mxu0 0.0
    %732 = vmatprep.subr.mxu0 0.0
    %733 = vmatpush2.msra.mxu0 0.0
    %734 = vmatprep.subr.mxu0 0.0
    %735 = vmatpush2.msra.mxu0 0.0
    %736 = vmatprep.subr.mxu0 0.0
    %737 = vmatpush2.msra.mxu0 0.0
    %738 = vmatprep.subr.mxu0 0.0
    %739 = vmatpush2.msra.mxu0 0.0
    %740 = vmatprep.subr.mxu0 0.0
    %741 = vmatpush2.msra.mxu0 0.0
    %742 = vmatprep.mubr.f32.mxu0 0.0
    %743 = vmatmul.mubr.f32.gmra.mxu0 %v676
    %v744 = vpop.f32.mrf.mxu0
    %v745 = vadd.f32 %v235, %v744
    %v746 = vpop.f32.mrf.mxu0
    %747 = vdwg.mxu0
    %v749 = vsel %vm236, %v234, 0
    %751 = vmatprep.subr.mxu0 0.0
    %752 = vmatpush1.msra.mxu0 0.0
    %753 = vmatprep.subr.mxu0 0.0
    %754 = vmatpush1.msra.mxu0 0.0
    %755 = vmatprep.subr.mxu0 0.0
    %756 = vmatpush1.msra.mxu0 0.0
    %757 = vmatprep.subr.mxu0 0.0
    %758 = vmatpush1.msra.mxu0 0.0
    %759 = vmatprep.subr.mxu0 0.0
    %760 = vmatpush1.msra.mxu0 0.0
    %761 = vmatprep.subr.mxu0 0.0
    %762 = vmatpush1.msra.mxu0 0.0
    %763 = vmatprep.subr.mxu0 0.0
    %764 = vmatpush1.msra.mxu0 0.0
    %765 = vmatprep.subr.mxu0 0.0
    %766 = vmatpush1.msra.mxu0 0.0
    %767 = vmatprep.subr.mxu0 0.0
    %768 = vmatpush1.msra.mxu0 0.0
    %769 = vmatprep.subr.mxu0 0.0
    %770 = vmatpush1.msra.mxu0 0.0
    %771 = vmatprep.subr.mxu0 0.0
    %772 = vmatpush1.msra.mxu0 0.0
    %773 = vmatprep.subr.mxu0 0.0
    %774 = vmatpush1.msra.mxu0 0.0
    %775 = vmatprep.subr.mxu0 0.0
    %776 = vmatpush1.msra.mxu0 %v226
    %777 = vmatprep.subr.mxu0 0.0
    %778 = vmatpush1.msra.mxu0 %v225
    %779 = vmatprep.subr.mxu0 0.0
    %780 = vmatpush1.msra.mxu0 %v224
    %781 = vmatprep.subr.mxu0 0.0
    %782 = vmatpush1.msra.mxu0 %v223
    %783 = vmatprep.subr.mxu0 0.0
    %784 = vmatpush2.msra.mxu0 0.0
    %785 = vmatprep.subr.mxu0 0.0
    %786 = vmatpush2.msra.mxu0 0.0
    %787 = vmatprep.subr.mxu0 0.0
    %788 = vmatpush2.msra.mxu0 0.0
    %789 = vmatprep.subr.mxu0 0.0
    %790 = vmatpush2.msra.mxu0 0.0
    %791 = vmatprep.subr.mxu0 0.0
    %792 = vmatpush2.msra.mxu0 0.0
    %793 = vmatprep.subr.mxu0 0.0
    %794 = vmatpush2.msra.mxu0 0.0
    %795 = vmatprep.subr.mxu0 0.0
    %796 = vmatpush2.msra.mxu0 0.0
    %797 = vmatprep.subr.mxu0 0.0
    %798 = vmatpush2.msra.mxu0 0.0
    %799 = vmatprep.subr.mxu0 0.0
    %800 = vmatpush2.msra.mxu0 0.0
    %801 = vmatprep.subr.mxu0 0.0
    %802 = vmatpush2.msra.mxu0 0.0
    %803 = vmatprep.subr.mxu0 0.0
    %804 = vmatpush2.msra.mxu0 0.0
    %805 = vmatprep.subr.mxu0 0.0
    %806 = vmatpush2.msra.mxu0 0.0
    %807 = vmatprep.subr.mxu0 0.0
    %808 = vmatpush2.msra.mxu0 0.0
    %809 = vmatprep.subr.mxu0 0.0
    %810 = vmatpush2.msra.mxu0 0.0
    %811 = vmatprep.subr.mxu0 0.0
    %812 = vmatpush2.msra.mxu0 0.0
    %813 = vmatprep.subr.mxu0 0.0
    %814 = vmatpush2.msra.mxu0 0.0
    %815 = vmatprep.mubr.f32.mxu0 0.0
    %816 = vmatmul.mubr.f32.gmra.mxu0 %v749
    %v817 = vpop.f32.mrf.mxu0
    %v818 = vadd.f32 %v235, %v817
    %v819 = vpop.f32.mrf.mxu0
    %820 = vdwg.mxu0
    %v821 = vmax.f32 %v307, 0.0
    %v822 = vmax.f32 %v380, 0.0
    %v823 = vmax.f32 %v453, 0.0
    %v824 = vmax.f32 %v526, 0.0
    %v825 = vmax.f32 %v599, 0.0
    %v826 = vmax.f32 %v672, 0.0
    %v827 = vmax.f32 %v745, 0.0
    %v828 = vmax.f32 %v818, 0.0
    %v829 = vld [vmem:[%s3] sm:$0xff]
    %v830 = vld [vmem:[%s3 + $0x8] sm:$0xff]
    %v831 = vld [vmem:[%s3 + $0x10] sm:$0xff]
    %v832 = vld [vmem:[%s3 + $0x18] sm:$0xff]
    %v833 = vld [vmem:[%s3 + $0x20] sm:$0xff]
    %v834 = vld [vmem:[%s3 + $0x28] sm:$0xff]
    %v835 = vld [vmem:[%s3 + $0x30] sm:$0xff]
    %v836 = vld [vmem:[%s3 + $0x38] sm:$0xff]
    %v837 = vld [vmem:[%s3 + $0x40] sm:$0xff]
    %v838 = vld [vmem:[%s3 + $0x48] sm:$0xff]
    %v839 = vld [vmem:[%s3 + $0x50] sm:$0xff]
    %v840 = vld [vmem:[%s3 + $0x58] sm:$0xff]
    %v841 = vld [vmem:[%s3 + $0x60] sm:$0xff]
    %v842 = vld [vmem:[%s3 + $0x68] sm:$0xff]
    %v843 = vld [vmem:[%s3 + $0x70] sm:$0xff]
    %v844 = vld [vmem:[%s3 + $0x78] sm:$0xff]
    %v845 = vld [vmem:[%s3 + $0x80] sm:$0xff]
    %v846 = vld [vmem:[%s3 + $0x88] sm:$0xff]
    %v847 = vld [vmem:[%s3 + $0x90] sm:$0xff]
    %v848 = vld [vmem:[%s3 + $0x98] sm:$0xff]
    %v849 = vld [vmem:[%s3 + $0xa0] sm:$0xff]
    %v850 = vld [vmem:[%s3 + $0xa8] sm:$0xff]
    %v851 = vld [vmem:[%s3 + $0xb0] sm:$0xff]
    %v852 = vld [vmem:[%s3 + $0xb8] sm:$0xff]
    %v853 = vld [vmem:[%s3 + $0xc0] sm:$0xff]
    %v854 = vld [vmem:[%s3 + $0xc8] sm:$0xff]
    %v855 = vld [vmem:[%s3 + $0xd0] sm:$0xff]
    %v856 = vld [vmem:[%s3 + $0xd8] sm:$0xff]
    %v857 = vld [vmem:[%s3 + $0xe0] sm:$0xff]
    %v858 = vld [vmem:[%s3 + $0xe8] sm:$0xff]
    %v859 = vld [vmem:[%s3 + $0xf0] sm:$0xff]
    %v860 = vld [vmem:[%s3 + $0xf8] sm:$0xff]
    %v861 = vld [vmem:[%s4] sm:$0xff]
    %v862 = vld [vmem:[%s4 + $0x8] sm:$0xff]
    %v863 = vld [vmem:[%s4 + $0x10] sm:$0xff]
    %v864 = vld [vmem:[%s4 + $0x18] sm:$0xff]
    %vm865 = vcmask 64512
    %v867 = vsel %vm865, %v829, 0
    %v870 = vsel %vm865, %v830, 0
    %v873 = vsel %vm865, %v831, 0
    %v876 = vsel %vm865, %v832, 0
    %878 = vmatprep.subr.mxu0 0.0
    %879 = vmatpush1.msra.mxu0 0.0
    %880 = vmatprep.subr.mxu0 0.0
    %881 = vmatpush1.msra.mxu0 0.0
    %882 = vmatprep.subr.mxu0 0.0
    %883 = vmatpush1.msra.mxu0 0.0
    %884 = vmatprep.subr.mxu0 0.0
    %885 = vmatpush1.msra.mxu0 0.0
    %886 = vmatprep.subr.mxu0 0.0
    %887 = vmatpush1.msra.mxu0 0.0
    %888 = vmatprep.subr.mxu0 0.0
    %889 = vmatpush1.msra.mxu0 0.0
    %890 = vmatprep.subr.mxu0 0.0
    %891 = vmatpush1.msra.mxu0 0.0
    %892 = vmatprep.subr.mxu0 0.0
    %893 = vmatpush1.msra.mxu0 0.0
    %894 = vmatprep.subr.mxu0 0.0
    %895 = vmatpush1.msra.mxu0 0.0
    %896 = vmatprep.subr.mxu0 0.0
    %897 = vmatpush1.msra.mxu0 0.0
    %898 = vmatprep.subr.mxu0 0.0
    %899 = vmatpush1.msra.mxu0 0.0
    %900 = vmatprep.subr.mxu0 0.0
    %901 = vmatpush1.msra.mxu0 0.0
    %902 = vmatprep.subr.mxu0 0.0
    %903 = vmatpush1.msra.mxu0 0.0
    %904 = vmatprep.subr.mxu0 0.0
    %905 = vmatpush1.msra.mxu0 0.0
    %906 = vmatprep.subr.mxu0 0.0
    %907 = vmatpush1.msra.mxu0 0.0
    %908 = vmatprep.subr.mxu0 0.0
    %909 = vmatpush1.msra.mxu0 %v821
    %910 = vmatprep.subr.mxu0 0.0
    %911 = vmatpush2.msra.mxu0 0.0
    %912 = vmatprep.subr.mxu0 0.0
    %913 = vmatpush2.msra.mxu0 0.0
    %914 = vmatprep.subr.mxu0 0.0
    %915 = vmatpush2.msra.mxu0 0.0
    %916 = vmatprep.subr.mxu0 0.0
    %917 = vmatpush2.msra.mxu0 0.0
    %918 = vmatprep.subr.mxu0 0.0
    %919 = vmatpush2.msra.mxu0 0.0
    %920 = vmatprep.subr.mxu0 0.0
    %921 = vmatpush2.msra.mxu0 0.0
    %922 = vmatprep.subr.mxu0 0.0
    %923 = vmatpush2.msra.mxu0 0.0
    %924 = vmatprep.subr.mxu0 0.0
    %925 = vmatpush2.msra.mxu0 0.0
    %926 = vmatprep.subr.mxu0 0.0
    %927 = vmatpush2.msra.mxu0 0.0
    %928 = vmatprep.subr.mxu0 0.0
    %929 = vmatpush2.msra.mxu0 0.0
    %930 = vmatprep.subr.mxu0 0.0
    %931 = vmatpush2.msra.mxu0 0.0
    %932 = vmatprep.subr.mxu0 0.0
    %933 = vmatpush2.msra.mxu0 0.0
    %934 = vmatprep.subr.mxu0 0.0
    %935 = vmatpush2.msra.mxu0 0.0
    %936 = vmatprep.subr.mxu0 0.0
    %937 = vmatpush2.msra.mxu0 0.0
    %938 = vmatprep.subr.mxu0 0.0
    %939 = vmatpush2.msra.mxu0 0.0
    %940 = vmatprep.subr.mxu0 0.0
    %941 = vmatpush2.msra.mxu0 0.0
    %942 = vmatprep.mubr.f32.mxu0 0.0
    %943 = vmatmul.mubr.f32.gmra.mxu0 %v867
    %v944 = vpop.f32.mrf.mxu0
    %v945 = vadd.f32 %v861, %v944
    %v946 = vpop.f32.mrf.mxu0
    %947 = vmatprep.mubr.f32.mxu0 0.0
    %948 = vmatmul.mubr.f32.gmra.mxu0 %v870
    %v949 = vpop.f32.mrf.mxu0
    %v950 = vadd.f32 %v862, %v949
    %v951 = vpop.f32.mrf.mxu0
    %952 = vmatprep.mubr.f32.mxu0 0.0
    %953 = vmatmul.mubr.f32.gmra.mxu0 %v873
    %v954 = vpop.f32.mrf.mxu0
    %v955 = vadd.f32 %v863, %v954
    %v956 = vpop.f32.mrf.mxu0
    %957 = vmatprep.mubr.f32.mxu0 0.0
    %958 = vmatmul.mubr.f32.gmra.mxu0 %v876
    %v959 = vpop.f32.mrf.mxu0
    %v960 = vadd.f32 %v864, %v959
    %v961 = vpop.f32.mrf.mxu0
    %962 = vdwg.mxu0
    %v964 = vsel %vm865, %v833, 0
    %v967 = vsel %vm865, %v834, 0
    %v970 = vsel %vm865, %v835, 0
    %v973 = vsel %vm865, %v836, 0
    %975 = vmatprep.subr.mxu0 0.0
    %976 = vmatpush1.msra.mxu0 0.0
    %977 = vmatprep.subr.mxu0 0.0
    %978 = vmatpush1.msra.mxu0 0.0
    %979 = vmatprep.subr.mxu0 0.0
    %980 = vmatpush1.msra.mxu0 0.0
    %981 = vmatprep.subr.mxu0 0.0
    %982 = vmatpush1.msra.mxu0 0.0
    %983 = vmatprep.subr.mxu0 0.0
    %984 = vmatpush1.msra.mxu0 0.0
    %985 = vmatprep.subr.mxu0 0.0
    %986 = vmatpush1.msra.mxu0 0.0
    %987 = vmatprep.subr.mxu0 0.0
    %988 = vmatpush1.msra.mxu0 0.0
    %989 = vmatprep.subr.mxu0 0.0
    %990 = vmatpush1.msra.mxu0 0.0
    %991 = vmatprep.subr.mxu0 0.0
    %992 = vmatpush1.msra.mxu0 0.0
    %993 = vmatprep.subr.mxu0 0.0
    %994 = vmatpush1.msra.mxu0 0.0
    %995 = vmatprep.subr.mxu0 0.0
    %996 = vmatpush1.msra.mxu0 0.0
    %997 = vmatprep.subr.mxu0 0.0
    %998 = vmatpush1.msra.mxu0 0.0
    %999 = vmatprep.subr.mxu0 0.0
    %1000 = vmatpush1.msra.mxu0 0.0
    %1001 = vmatprep.subr.mxu0 0.0
    %1002 = vmatpush1.msra.mxu0 0.0
    %1003 = vmatprep.subr.mxu0 0.0
    %1004 = vmatpush1.msra.mxu0 0.0
    %1005 = vmatprep.subr.mxu0 0.0
    %1006 = vmatpush1.msra.mxu0 %v822
    %1007 = vmatprep.subr.mxu0 0.0
    %1008 = vmatpush2.msra.mxu0 0.0
    %1009 = vmatprep.subr.mxu0 0.0
    %1010 = vmatpush2.msra.mxu0 0.0
    %1011 = vmatprep.subr.mxu0 0.0
    %1012 = vmatpush2.msra.mxu0 0.0
    %1013 = vmatprep.subr.mxu0 0.0
    %1014 = vmatpush2.msra.mxu0 0.0
    %1015 = vmatprep.subr.mxu0 0.0
    %1016 = vmatpush2.msra.mxu0 0.0
    %1017 = vmatprep.subr.mxu0 0.0
    %1018 = vmatpush2.msra.mxu0 0.0
    %1019 = vmatprep.subr.mxu0 0.0
    %1020 = vmatpush2.msra.mxu0 0.0
    %1021 = vmatprep.subr.mxu0 0.0
    %1022 = vmatpush2.msra.mxu0 0.0
    %1023 = vmatprep.subr.mxu0 0.0
    %1024 = vmatpush2.msra.mxu0 0.0
    %1025 = vmatprep.subr.mxu0 0.0
    %1026 = vmatpush2.msra.mxu0 0.0
    %1027 = vmatprep.subr.mxu0 0.0
    %1028 = vmatpush2.msra.mxu0 0.0
    %1029 = vmatprep.subr.mxu0 0.0
    %1030 = vmatpush2.msra.mxu0 0.0
    %1031 = vmatprep.subr.mxu0 0.0
    %1032 = vmatpush2.msra.mxu0 0.0
    %1033 = vmatprep.subr.mxu0 0.0
    %1034 = vmatpush2.msra.mxu0 0.0
    %1035 = vmatprep.subr.mxu0 0.0
    %1036 = vmatpush2.msra.mxu0 0.0
    %1037 = vmatprep.subr.mxu0 0.0
    %1038 = vmatpush2.msra.mxu0 0.0
    %1039 = vmatprep.mubr.f32.mxu0 0.0
    %1040 = vmatmul.mubr.f32.gmra.mxu0 %v964
    %v1041 = vpop.f32.mrf.mxu0
    %v1042 = vadd.f32 %v861, %v1041
    %v1043 = vpop.f32.mrf.mxu0
    %1044 = vmatprep.mubr.f32.mxu0 0.0
    %1045 = vmatmul.mubr.f32.gmra.mxu0 %v967
    %v1046 = vpop.f32.mrf.mxu0
    %v1047 = vadd.f32 %v862, %v1046
    %v1048 = vpop.f32.mrf.mxu0
    %1049 = vmatprep.mubr.f32.mxu0 0.0
    %1050 = vmatmul.mubr.f32.gmra.mxu0 %v970
    %v1051 = vpop.f32.mrf.mxu0
    %v1052 = vadd.f32 %v863, %v1051
    %v1053 = vpop.f32.mrf.mxu0
    %1054 = vmatprep.mubr.f32.mxu0 0.0
    %1055 = vmatmul.mubr.f32.gmra.mxu0 %v973
    %v1056 = vpop.f32.mrf.mxu0
    %v1057 = vadd.f32 %v864, %v1056
    %v1058 = vpop.f32.mrf.mxu0
    %1059 = vdwg.mxu0
    %v1061 = vsel %vm865, %v837, 0
    %v1064 = vsel %vm865, %v838, 0
    %v1067 = vsel %vm865, %v839, 0
    %v1070 = vsel %vm865, %v840, 0
    %1072 = vmatprep.subr.mxu0 0.0
    %1073 = vmatpush1.msra.mxu0 0.0
    %1074 = vmatprep.subr.mxu0 0.0
    %1075 = vmatpush1.msra.mxu0 0.0
    %1076 = vmatprep.subr.mxu0 0.0
    %1077 = vmatpush1.msra.mxu0 0.0
    %1078 = vmatprep.subr.mxu0 0.0
    %1079 = vmatpush1.msra.mxu0 0.0
    %1080 = vmatprep.subr.mxu0 0.0
    %1081 = vmatpush1.msra.mxu0 0.0
    %1082 = vmatprep.subr.mxu0 0.0
    %1083 = vmatpush1.msra.mxu0 0.0
    %1084 = vmatprep.subr.mxu0 0.0
    %1085 = vmatpush1.msra.mxu0 0.0
    %1086 = vmatprep.subr.mxu0 0.0
    %1087 = vmatpush1.msra.mxu0 0.0
    %1088 = vmatprep.subr.mxu0 0.0
    %1089 = vmatpush1.msra.mxu0 0.0
    %1090 = vmatprep.subr.mxu0 0.0
    %1091 = vmatpush1.msra.mxu0 0.0
    %1092 = vmatprep.subr.mxu0 0.0
    %1093 = vmatpush1.msra.mxu0 0.0
    %1094 = vmatprep.subr.mxu0 0.0
    %1095 = vmatpush1.msra.mxu0 0.0
    %1096 = vmatprep.subr.mxu0 0.0
    %1097 = vmatpush1.msra.mxu0 0.0
    %1098 = vmatprep.subr.mxu0 0.0
    %1099 = vmatpush1.msra.mxu0 0.0
    %1100 = vmatprep.subr.mxu0 0.0
    %1101 = vmatpush1.msra.mxu0 0.0
    %1102 = vmatprep.subr.mxu0 0.0
    %1103 = vmatpush1.msra.mxu0 %v823
    %1104 = vmatprep.subr.mxu0 0.0
    %1105 = vmatpush2.msra.mxu0 0.0
    %1106 = vmatprep.subr.mxu0 0.0
    %1107 = vmatpush2.msra.mxu0 0.0
    %1108 = vmatprep.subr.mxu0 0.0
    %1109 = vmatpush2.msra.mxu0 0.0
    %1110 = vmatprep.subr.mxu0 0.0
    %1111 = vmatpush2.msra.mxu0 0.0
    %1112 = vmatprep.subr.mxu0 0.0
    %1113 = vmatpush2.msra.mxu0 0.0
    %1114 = vmatprep.subr.mxu0 0.0
    %1115 = vmatpush2.msra.mxu0 0.0
    %1116 = vmatprep.subr.mxu0 0.0
    %1117 = vmatpush2.msra.mxu0 0.0
    %1118 = vmatprep.subr.mxu0 0.0
    %1119 = vmatpush2.msra.mxu0 0.0
    %1120 = vmatprep.subr.mxu0 0.0
    %1121 = vmatpush2.msra.mxu0 0.0
    %1122 = vmatprep.subr.mxu0 0.0
    %1123 = vmatpush2.msra.mxu0 0.0
    %1124 = vmatprep.subr.mxu0 0.0
    %1125 = vmatpush2.msra.mxu0 0.0
    %1126 = vmatprep.subr.mxu0 0.0
    %1127 = vmatpush2.msra.mxu0 0.0
    %1128 = vmatprep.subr.mxu0 0.0
    %1129 = vmatpush2.msra.mxu0 0.0
    %1130 = vmatprep.subr.mxu0 0.0
    %1131 = vmatpush2.msra.mxu0 0.0
    %1132 = vmatprep.subr.mxu0 0.0
    %1133 = vmatpush2.msra.mxu0 0.0
    %1134 = vmatprep.subr.mxu0 0.0
    %1135 = vmatpush2.msra.mxu0 0.0
    %1136 = vmatprep.mubr.f32.mxu0 0.0
    %1137 = vmatmul.mubr.f32.gmra.mxu0 %v1061
    %v1138 = vpop.f32.mrf.mxu0
    %v1139 = vadd.f32 %v861, %v1138
    %v1140 = vpop.f32.mrf.mxu0
    %1141 = vmatprep.mubr.f32.mxu0 0.0
    %1142 = vmatmul.mubr.f32.gmra.mxu0 %v1064
    %v1143 = vpop.f32.mrf.mxu0
    %v1144 = vadd.f32 %v862, %v1143
    %v1145 = vpop.f32.mrf.mxu0
    %1146 = vmatprep.mubr.f32.mxu0 0.0
    %1147 = vmatmul.mubr.f32.gmra.mxu0 %v1067
    %v1148 = vpop.f32.mrf.mxu0
    %v1149 = vadd.f32 %v863, %v1148
    %v1150 = vpop.f32.mrf.mxu0
    %1151 = vmatprep.mubr.f32.mxu0 0.0
    %1152 = vmatmul.mubr.f32.gmra.mxu0 %v1070
    %v1153 = vpop.f32.mrf.mxu0
    %v1154 = vadd.f32 %v864, %v1153
    %v1155 = vpop.f32.mrf.mxu0
    %1156 = vdwg.mxu0
    %v1158 = vsel %vm865, %v841, 0
    %v1161 = vsel %vm865, %v842, 0
    %v1164 = vsel %vm865, %v843, 0
    %v1167 = vsel %vm865, %v844, 0
    %1169 = vmatprep.subr.mxu0 0.0
    %1170 = vmatpush1.msra.mxu0 0.0
    %1171 = vmatprep.subr.mxu0 0.0
    %1172 = vmatpush1.msra.mxu0 0.0
    %1173 = vmatprep.subr.mxu0 0.0
    %1174 = vmatpush1.msra.mxu0 0.0
    %1175 = vmatprep.subr.mxu0 0.0
    %1176 = vmatpush1.msra.mxu0 0.0
    %1177 = vmatprep.subr.mxu0 0.0
    %1178 = vmatpush1.msra.mxu0 0.0
    %1179 = vmatprep.subr.mxu0 0.0
    %1180 = vmatpush1.msra.mxu0 0.0
    %1181 = vmatprep.subr.mxu0 0.0
    %1182 = vmatpush1.msra.mxu0 0.0
    %1183 = vmatprep.subr.mxu0 0.0
    %1184 = vmatpush1.msra.mxu0 0.0
    %1185 = vmatprep.subr.mxu0 0.0
    %1186 = vmatpush1.msra.mxu0 0.0
    %1187 = vmatprep.subr.mxu0 0.0
    %1188 = vmatpush1.msra.mxu0 0.0
    %1189 = vmatprep.subr.mxu0 0.0
    %1190 = vmatpush1.msra.mxu0 0.0
    %1191 = vmatprep.subr.mxu0 0.0
    %1192 = vmatpush1.msra.mxu0 0.0
    %1193 = vmatprep.subr.mxu0 0.0
    %1194 = vmatpush1.msra.mxu0 0.0
    %1195 = vmatprep.subr.mxu0 0.0
    %1196 = vmatpush1.msra.mxu0 0.0
    %1197 = vmatprep.subr.mxu0 0.0
    %1198 = vmatpush1.msra.mxu0 0.0
    %1199 = vmatprep.subr.mxu0 0.0
    %1200 = vmatpush1.msra.mxu0 %v824
    %1201 = vmatprep.subr.mxu0 0.0
    %1202 = vmatpush2.msra.mxu0 0.0
    %1203 = vmatprep.subr.mxu0 0.0
    %1204 = vmatpush2.msra.mxu0 0.0
    %1205 = vmatprep.subr.mxu0 0.0
    %1206 = vmatpush2.msra.mxu0 0.0
    %1207 = vmatprep.subr.mxu0 0.0
    %1208 = vmatpush2.msra.mxu0 0.0
    %1209 = vmatprep.subr.mxu0 0.0
    %1210 = vmatpush2.msra.mxu0 0.0
    %1211 = vmatprep.subr.mxu0 0.0
    %1212 = vmatpush2.msra.mxu0 0.0
    %1213 = vmatprep.subr.mxu0 0.0
    %1214 = vmatpush2.msra.mxu0 0.0
    %1215 = vmatprep.subr.mxu0 0.0
    %1216 = vmatpush2.msra.mxu0 0.0
    %1217 = vmatprep.subr.mxu0 0.0
    %1218 = vmatpush2.msra.mxu0 0.0
    %1219 = vmatprep.subr.mxu0 0.0
    %1220 = vmatpush2.msra.mxu0 0.0
    %1221 = vmatprep.subr.mxu0 0.0
    %1222 = vmatpush2.msra.mxu0 0.0
    %1223 = vmatprep.subr.mxu0 0.0
    %1224 = vmatpush2.msra.mxu0 0.0
    %1225 = vmatprep.subr.mxu0 0.0
    %1226 = vmatpush2.msra.mxu0 0.0
    %1227 = vmatprep.subr.mxu0 0.0
    %1228 = vmatpush2.msra.mxu0 0.0
    %1229 = vmatprep.subr.mxu0 0.0
    %1230 = vmatpush2.msra.mxu0 0.0
    %1231 = vmatprep.subr.mxu0 0.0
    %1232 = vmatpush2.msra.mxu0 0.0
    %1233 = vmatprep.mubr.f32.mxu0 0.0
    %1234 = vmatmul.mubr.f32.gmra.mxu0 %v1158
    %v1235 = vpop.f32.mrf.mxu0
    %v1236 = vadd.f32 %v861, %v1235
    %v1237 = vpop.f32.mrf.mxu0
    %1238 = vmatprep.mubr.f32.mxu0 0.0
    %1239 = vmatmul.mubr.f32.gmra.mxu0 %v1161
    %v1240 = vpop.f32.mrf.mxu0
    %v1241 = vadd.f32 %v862, %v1240
    %v1242 = vpop.f32.mrf.mxu0
    %1243 = vmatprep.mubr.f32.mxu0 0.0
    %1244 = vmatmul.mubr.f32.gmra.mxu0 %v1164
    %v1245 = vpop.f32.mrf.mxu0
    %v1246 = vadd.f32 %v863, %v1245
    %v1247 = vpop.f32.mrf.mxu0
    %1248 = vmatprep.mubr.f32.mxu0 0.0
    %1249 = vmatmul.mubr.f32.gmra.mxu0 %v1167
    %v1250 = vpop.f32.mrf.mxu0
    %v1251 = vadd.f32 %v864, %v1250
    %v1252 = vpop.f32.mrf.mxu0
    %1253 = vdwg.mxu0
    %v1255 = vsel %vm865, %v845, 0
    %v1258 = vsel %vm865, %v846, 0
    %v1261 = vsel %vm865, %v847, 0
    %v1264 = vsel %vm865, %v848, 0
    %1266 = vmatprep.subr.mxu0 0.0
    %1267 = vmatpush1.msra.mxu0 0.0
    %1268 = vmatprep.subr.mxu0 0.0
    %1269 = vmatpush1.msra.mxu0 0.0
    %1270 = vmatprep.subr.mxu0 0.0
    %1271 = vmatpush1.msra.mxu0 0.0
    %1272 = vmatprep.subr.mxu0 0.0
    %1273 = vmatpush1.msra.mxu0 0.0
    %1274 = vmatprep.subr.mxu0 0.0
    %1275 = vmatpush1.msra.mxu0 0.0
    %1276 = vmatprep.subr.mxu0 0.0
    %1277 = vmatpush1.msra.mxu0 0.0
    %1278 = vmatprep.subr.mxu0 0.0
    %1279 = vmatpush1.msra.mxu0 0.0
    %1280 = vmatprep.subr.mxu0 0.0
    %1281 = vmatpush1.msra.mxu0 0.0
    %1282 = vmatprep.subr.mxu0 0.0
    %1283 = vmatpush1.msra.mxu0 0.0
    %1284 = vmatprep.subr.mxu0 0.0
    %1285 = vmatpush1.msra.mxu0 0.0
    %1286 = vmatprep.subr.mxu0 0.0
    %1287 = vmatpush1.msra.mxu0 0.0
    %1288 = vmatprep.subr.mxu0 0.0
    %1289 = vmatpush1.msra.mxu0 0.0
    %1290 = vmatprep.subr.mxu0 0.0
    %1291 = vmatpush1.msra.mxu0 0.0
    %1292 = vmatprep.subr.mxu0 0.0
    %1293 = vmatpush1.msra.mxu0 0.0
    %1294 = vmatprep.subr.mxu0 0.0
    %1295 = vmatpush1.msra.mxu0 0.0
    %1296 = vmatprep.subr.mxu0 0.0
    %1297 = vmatpush1.msra.mxu0 %v825
    %1298 = vmatprep.subr.mxu0 0.0
    %1299 = vmatpush2.msra.mxu0 0.0
    %1300 = vmatprep.subr.mxu0 0.0
    %1301 = vmatpush2.msra.mxu0 0.0
    %1302 = vmatprep.subr.mxu0 0.0
    %1303 = vmatpush2.msra.mxu0 0.0
    %1304 = vmatprep.subr.mxu0 0.0
    %1305 = vmatpush2.msra.mxu0 0.0
    %1306 = vmatprep.subr.mxu0 0.0
    %1307 = vmatpush2.msra.mxu0 0.0
    %1308 = vmatprep.subr.mxu0 0.0
    %1309 = vmatpush2.msra.mxu0 0.0
    %1310 = vmatprep.subr.mxu0 0.0
    %1311 = vmatpush2.msra.mxu0 0.0
    %1312 = vmatprep.subr.mxu0 0.0
    %1313 = vmatpush2.msra.mxu0 0.0
    %1314 = vmatprep.subr.mxu0 0.0
    %1315 = vmatpush2.msra.mxu0 0.0
    %1316 = vmatprep.subr.mxu0 0.0
    %1317 = vmatpush2.msra.mxu0 0.0
    %1318 = vmatprep.subr.mxu0 0.0
    %1319 = vmatpush2.msra.mxu0 0.0
    %1320 = vmatprep.subr.mxu0 0.0
    %1321 = vmatpush2.msra.mxu0 0.0
    %1322 = vmatprep.subr.mxu0 0.0
    %1323 = vmatpush2.msra.mxu0 0.0
    %1324 = vmatprep.subr.mxu0 0.0
    %1325 = vmatpush2.msra.mxu0 0.0
    %1326 = vmatprep.subr.mxu0 0.0
    %1327 = vmatpush2.msra.mxu0 0.0
    %1328 = vmatprep.subr.mxu0 0.0
    %1329 = vmatpush2.msra.mxu0 0.0
    %1330 = vmatprep.mubr.f32.mxu0 0.0
    %1331 = vmatmul.mubr.f32.gmra.mxu0 %v1255
    %v1332 = vpop.f32.mrf.mxu0
    %v1333 = vadd.f32 %v861, %v1332
    %v1334 = vpop.f32.mrf.mxu0
    %1335 = vmatprep.mubr.f32.mxu0 0.0
    %1336 = vmatmul.mubr.f32.gmra.mxu0 %v1258
    %v1337 = vpop.f32.mrf.mxu0
    %v1338 = vadd.f32 %v862, %v1337
    %v1339 = vpop.f32.mrf.mxu0
    %1340 = vmatprep.mubr.f32.mxu0 0.0
    %1341 = vmatmul.mubr.f32.gmra.mxu0 %v1261
    %v1342 = vpop.f32.mrf.mxu0
    %v1343 = vadd.f32 %v863, %v1342
    %v1344 = vpop.f32.mrf.mxu0
    %1345 = vmatprep.mubr.f32.mxu0 0.0
    %1346 = vmatmul.mubr.f32.gmra.mxu0 %v1264
    %v1347 = vpop.f32.mrf.mxu0
    %v1348 = vadd.f32 %v864, %v1347
    %v1349 = vpop.f32.mrf.mxu0
    %1350 = vdwg.mxu0
    %v1352 = vsel %vm865, %v849, 0
    %v1355 = vsel %vm865, %v850, 0
    %v1358 = vsel %vm865, %v851, 0
    %v1361 = vsel %vm865, %v852, 0
    %1363 = vmatprep.subr.mxu0 0.0
    %1364 = vmatpush1.msra.mxu0 0.0
    %1365 = vmatprep.subr.mxu0 0.0
    %1366 = vmatpush1.msra.mxu0 0.0
    %1367 = vmatprep.subr.mxu0 0.0
    %1368 = vmatpush1.msra.mxu0 0.0
    %1369 = vmatprep.subr.mxu0 0.0
    %1370 = vmatpush1.msra.mxu0 0.0
    %1371 = vmatprep.subr.mxu0 0.0
    %1372 = vmatpush1.msra.mxu0 0.0
    %1373 = vmatprep.subr.mxu0 0.0
    %1374 = vmatpush1.msra.mxu0 0.0
    %1375 = vmatprep.subr.mxu0 0.0
    %1376 = vmatpush1.msra.mxu0 0.0
    %1377 = vmatprep.subr.mxu0 0.0
    %1378 = vmatpush1.msra.mxu0 0.0
    %1379 = vmatprep.subr.mxu0 0.0
    %1380 = vmatpush1.msra.mxu0 0.0
    %1381 = vmatprep.subr.mxu0 0.0
    %1382 = vmatpush1.msra.mxu0 0.0
    %1383 = vmatprep.subr.mxu0 0.0
    %1384 = vmatpush1.msra.mxu0 0.0
    %1385 = vmatprep.subr.mxu0 0.0
    %1386 = vmatpush1.msra.mxu0 0.0
    %1387 = vmatprep.subr.mxu0 0.0
    %1388 = vmatpush1.msra.mxu0 0.0
    %1389 = vmatprep.subr.mxu0 0.0
    %1390 = vmatpush1.msra.mxu0 0.0
    %1391 = vmatprep.subr.mxu0 0.0
    %1392 = vmatpush1.msra.mxu0 0.0
    %1393 = vmatprep.subr.mxu0 0.0
    %1394 = vmatpush1.msra.mxu0 %v826
    %1395 = vmatprep.subr.mxu0 0.0
    %1396 = vmatpush2.msra.mxu0 0.0
    %1397 = vmatprep.subr.mxu0 0.0
    %1398 = vmatpush2.msra.mxu0 0.0
    %1399 = vmatprep.subr.mxu0 0.0
    %1400 = vmatpush2.msra.mxu0 0.0
    %1401 = vmatprep.subr.mxu0 0.0
    %1402 = vmatpush2.msra.mxu0 0.0
    %1403 = vmatprep.subr.mxu0 0.0
    %1404 = vmatpush2.msra.mxu0 0.0
    %1405 = vmatprep.subr.mxu0 0.0
    %1406 = vmatpush2.msra.mxu0 0.0
    %1407 = vmatprep.subr.mxu0 0.0
    %1408 = vmatpush2.msra.mxu0 0.0
    %1409 = vmatprep.subr.mxu0 0.0
    %1410 = vmatpush2.msra.mxu0 0.0
    %1411 = vmatprep.subr.mxu0 0.0
    %1412 = vmatpush2.msra.mxu0 0.0
    %1413 = vmatprep.subr.mxu0 0.0
    %1414 = vmatpush2.msra.mxu0 0.0
    %1415 = vmatprep.subr.mxu0 0.0
    %1416 = vmatpush2.msra.mxu0 0.0
    %1417 = vmatprep.subr.mxu0 0.0
    %1418 = vmatpush2.msra.mxu0 0.0
    %1419 = vmatprep.subr.mxu0 0.0
    %1420 = vmatpush2.msra.mxu0 0.0
    %1421 = vmatprep.subr.mxu0 0.0
    %1422 = vmatpush2.msra.mxu0 0.0
    %1423 = vmatprep.subr.mxu0 0.0
    %1424 = vmatpush2.msra.mxu0 0.0
    %1425 = vmatprep.subr.mxu0 0.0
    %1426 = vmatpush2.msra.mxu0 0.0
    %1427 = vmatprep.mubr.f32.mxu0 0.0
    %1428 = vmatmul.mubr.f32.gmra.mxu0 %v1352
    %v1429 = vpop.f32.mrf.mxu0
    %v1430 = vadd.f32 %v861, %v1429
    %v1431 = vpop.f32.mrf.mxu0
    %1432 = vmatprep.mubr.f32.mxu0 0.0
    %1433 = vmatmul.mubr.f32.gmra.mxu0 %v1355
    %v1434 = vpop.f32.mrf.mxu0
    %v1435 = vadd.f32 %v862, %v1434
    %v1436 = vpop.f32.mrf.mxu0
    %1437 = vmatprep.mubr.f32.mxu0 0.0
    %1438 = vmatmul.mubr.f32.gmra.mxu0 %v1358
    %v1439 = vpop.f32.mrf.mxu0
    %v1440 = vadd.f32 %v863, %v1439
    %v1441 = vpop.f32.mrf.mxu0
    %1442 = vmatprep.mubr.f32.mxu0 0.0
    %1443 = vmatmul.mubr.f32.gmra.mxu0 %v1361
    %v1444 = vpop.f32.mrf.mxu0
    %v1445 = vadd.f32 %v864, %v1444
    %v1446 = vpop.f32.mrf.mxu0
    %1447 = vdwg.mxu0
    %v1449 = vsel %vm865, %v853, 0
    %v1452 = vsel %vm865, %v854, 0
    %v1455 = vsel %vm865, %v855, 0
    %v1458 = vsel %vm865, %v856, 0
    %1460 = vmatprep.subr.mxu0 0.0
    %1461 = vmatpush1.msra.mxu0 0.0
    %1462 = vmatprep.subr.mxu0 0.0
    %1463 = vmatpush1.msra.mxu0 0.0
    %1464 = vmatprep.subr.mxu0 0.0
    %1465 = vmatpush1.msra.mxu0 0.0
    %1466 = vmatprep.subr.mxu0 0.0
    %1467 = vmatpush1.msra.mxu0 0.0
    %1468 = vmatprep.subr.mxu0 0.0
    %1469 = vmatpush1.msra.mxu0 0.0
    %1470 = vmatprep.subr.mxu0 0.0
    %1471 = vmatpush1.msra.mxu0 0.0
    %1472 = vmatprep.subr.mxu0 0.0
    %1473 = vmatpush1.msra.mxu0 0.0
    %1474 = vmatprep.subr.mxu0 0.0
    %1475 = vmatpush1.msra.mxu0 0.0
    %1476 = vmatprep.subr.mxu0 0.0
    %1477 = vmatpush1.msra.mxu0 0.0
    %1478 = vmatprep.subr.mxu0 0.0
    %1479 = vmatpush1.msra.mxu0 0.0
    %1480 = vmatprep.subr.mxu0 0.0
    %1481 = vmatpush1.msra.mxu0 0.0
    %1482 = vmatprep.subr.mxu0 0.0
    %1483 = vmatpush1.msra.mxu0 0.0
    %1484 = vmatprep.subr.mxu0 0.0
    %1485 = vmatpush1.msra.mxu0 0.0
    %1486 = vmatprep.subr.mxu0 0.0
    %1487 = vmatpush1.msra.mxu0 0.0
    %1488 = vmatprep.subr.mxu0 0.0
    %1489 = vmatpush1.msra.mxu0 0.0
    %1490 = vmatprep.subr.mxu0 0.0
    %1491 = vmatpush1.msra.mxu0 %v827
    %1492 = vmatprep.subr.mxu0 0.0
    %1493 = vmatpush2.msra.mxu0 0.0
    %1494 = vmatprep.subr.mxu0 0.0
    %1495 = vmatpush2.msra.mxu0 0.0
    %1496 = vmatprep.subr.mxu0 0.0
    %1497 = vmatpush2.msra.mxu0 0.0
    %1498 = vmatprep.subr.mxu0 0.0
    %1499 = vmatpush2.msra.mxu0 0.0
    %1500 = vmatprep.subr.mxu0 0.0
    %1501 = vmatpush2.msra.mxu0 0.0
    %1502 = vmatprep.subr.mxu0 0.0
    %1503 = vmatpush2.msra.mxu0 0.0
    %1504 = vmatprep.subr.mxu0 0.0
    %1505 = vmatpush2.msra.mxu0 0.0
    %1506 = vmatprep.subr.mxu0 0.0
    %1507 = vmatpush2.msra.mxu0 0.0
    %1508 = vmatprep.subr.mxu0 0.0
    %1509 = vmatpush2.msra.mxu0 0.0
    %1510 = vmatprep.subr.mxu0 0.0
    %1511 = vmatpush2.msra.mxu0 0.0
    %1512 = vmatprep.subr.mxu0 0.0
    %1513 = vmatpush2.msra.mxu0 0.0
    %1514 = vmatprep.subr.mxu0 0.0
    %1515 = vmatpush2.msra.mxu0 0.0
    %1516 = vmatprep.subr.mxu0 0.0
    %1517 = vmatpush2.msra.mxu0 0.0
    %1518 = vmatprep.subr.mxu0 0.0
    %1519 = vmatpush2.msra.mxu0 0.0
    %1520 = vmatprep.subr.mxu0 0.0
    %1521 = vmatpush2.msra.mxu0 0.0
    %1522 = vmatprep.subr.mxu0 0.0
    %1523 = vmatpush2.msra.mxu0 0.0
    %1524 = vmatprep.mubr.f32.mxu0 0.0
    %1525 = vmatmul.mubr.f32.gmra.mxu0 %v1449
    %v1526 = vpop.f32.mrf.mxu0
    %v1527 = vadd.f32 %v861, %v1526
    %v1528 = vpop.f32.mrf.mxu0
    %1529 = vmatprep.mubr.f32.mxu0 0.0
    %1530 = vmatmul.mubr.f32.gmra.mxu0 %v1452
    %v1531 = vpop.f32.mrf.mxu0
    %v1532 = vadd.f32 %v862, %v1531
    %v1533 = vpop.f32.mrf.mxu0
    %1534 = vmatprep.mubr.f32.mxu0 0.0
    %1535 = vmatmul.mubr.f32.gmra.mxu0 %v1455
    %v1536 = vpop.f32.mrf.mxu0
    %v1537 = vadd.f32 %v863, %v1536
    %v1538 = vpop.f32.mrf.mxu0
    %1539 = vmatprep.mubr.f32.mxu0 0.0
    %1540 = vmatmul.mubr.f32.gmra.mxu0 %v1458
    %v1541 = vpop.f32.mrf.mxu0
    %v1542 = vadd.f32 %v864, %v1541
    %v1543 = vpop.f32.mrf.mxu0
    %1544 = vdwg.mxu0
    %v1546 = vsel %vm865, %v857, 0
    %v1549 = vsel %vm865, %v858, 0
    %v1552 = vsel %vm865, %v859, 0
    %v1555 = vsel %vm865, %v860, 0
    %1557 = vmatprep.subr.mxu0 0.0
    %1558 = vmatpush1.msra.mxu0 0.0
    %1559 = vmatprep.subr.mxu0 0.0
    %1560 = vmatpush1.msra.mxu0 0.0
    %1561 = vmatprep.subr.mxu0 0.0
    %1562 = vmatpush1.msra.mxu0 0.0
    %1563 = vmatprep.subr.mxu0 0.0
    %1564 = vmatpush1.msra.mxu0 0.0
    %1565 = vmatprep.subr.mxu0 0.0
    %1566 = vmatpush1.msra.mxu0 0.0
    %1567 = vmatprep.subr.mxu0 0.0
    %1568 = vmatpush1.msra.mxu0 0.0
    %1569 = vmatprep.subr.mxu0 0.0
    %1570 = vmatpush1.msra.mxu0 0.0
    %1571 = vmatprep.subr.mxu0 0.0
    %1572 = vmatpush1.msra.mxu0 0.0
    %1573 = vmatprep.subr.mxu0 0.0
    %1574 = vmatpush1.msra.mxu0 0.0
    %1575 = vmatprep.subr.mxu0 0.0
    %1576 = vmatpush1.msra.mxu0 0.0
    %1577 = vmatprep.subr.mxu0 0.0
    %1578 = vmatpush1.msra.mxu0 0.0
    %1579 = vmatprep.subr.mxu0 0.0
    %1580 = vmatpush1.msra.mxu0 0.0
    %1581 = vmatprep.subr.mxu0 0.0
    %1582 = vmatpush1.msra.mxu0 0.0
    %1583 = vmatprep.subr.mxu0 0.0
    %1584 = vmatpush1.msra.mxu0 0.0
    %1585 = vmatprep.subr.mxu0 0.0
    %1586 = vmatpush1.msra.mxu0 0.0
    %1587 = vmatprep.subr.mxu0 0.0
    %1588 = vmatpush1.msra.mxu0 %v828
    %1589 = vmatprep.subr.mxu0 0.0
    %1590 = vmatpush2.msra.mxu0 0.0
    %1591 = vmatprep.subr.mxu0 0.0
    %1592 = vmatpush2.msra.mxu0 0.0
    %1593 = vmatprep.subr.mxu0 0.0
    %1594 = vmatpush2.msra.mxu0 0.0
    %1595 = vmatprep.subr.mxu0 0.0
    %1596 = vmatpush2.msra.mxu0 0.0
    %1597 = vmatprep.subr.mxu0 0.0
    %1598 = vmatpush2.msra.mxu0 0.0
    %1599 = vmatprep.subr.mxu0 0.0
    %1600 = vmatpush2.msra.mxu0 0.0
    %1601 = vmatprep.subr.mxu0 0.0
    %1602 = vmatpush2.msra.mxu0 0.0
    %1603 = vmatprep.subr.mxu0 0.0
    %1604 = vmatpush2.msra.mxu0 0.0
    %1605 = vmatprep.subr.mxu0 0.0
    %1606 = vmatpush2.msra.mxu0 0.0
    %1607 = vmatprep.subr.mxu0 0.0
    %1608 = vmatpush2.msra.mxu0 0.0
    %1609 = vmatprep.subr.mxu0 0.0
    %1610 = vmatpush2.msra.mxu0 0.0
    %1611 = vmatprep.subr.mxu0 0.0
    %1612 = vmatpush2.msra.mxu0 0.0
    %1613 = vmatprep.subr.mxu0 0.0
    %1614 = vmatpush2.msra.mxu0 0.0
    %1615 = vmatprep.subr.mxu0 0.0
    %1616 = vmatpush2.msra.mxu0 0.0
    %1617 = vmatprep.subr.mxu0 0.0
    %1618 = vmatpush2.msra.mxu0 0.0
    %1619 = vmatprep.subr.mxu0 0.0
    %1620 = vmatpush2.msra.mxu0 0.0
    %1621 = vmatprep.mubr.f32.mxu0 0.0
    %1622 = vmatmul.mubr.f32.gmra.mxu0 %v1546
    %v1623 = vpop.f32.mrf.mxu0
    %v1624 = vadd.f32 %v861, %v1623
    %v1625 = vpop.f32.mrf.mxu0
    %1626 = vmatprep.mubr.f32.mxu0 0.0
    %1627 = vmatmul.mubr.f32.gmra.mxu0 %v1549
    %v1628 = vpop.f32.mrf.mxu0
    %v1629 = vadd.f32 %v862, %v1628
    %v1630 = vpop.f32.mrf.mxu0
    %1631 = vmatprep.mubr.f32.mxu0 0.0
    %1632 = vmatmul.mubr.f32.gmra.mxu0 %v1552
    %v1633 = vpop.f32.mrf.mxu0
    %v1634 = vadd.f32 %v863, %v1633
    %v1635 = vpop.f32.mrf.mxu0
    %1636 = vmatprep.mubr.f32.mxu0 0.0
    %1637 = vmatmul.mubr.f32.gmra.mxu0 %v1555
    %v1638 = vpop.f32.mrf.mxu0
    %v1639 = vadd.f32 %v864, %v1638
    %v1640 = vpop.f32.mrf.mxu0
    %1641 = vdwg.mxu0
    %v1642 = vxor.u32 %v945, 2147483648
    %v1643 = vxor.u32 %v950, 2147483648
    %v1644 = vxor.u32 %v955, 2147483648
    %v1645 = vxor.u32 %v960, 2147483648
    %v1646 = vxor.u32 %v1042, 2147483648
    %v1647 = vxor.u32 %v1047, 2147483648
    %v1648 = vxor.u32 %v1052, 2147483648
    %v1649 = vxor.u32 %v1057, 2147483648
    %v1650 = vxor.u32 %v1139, 2147483648
    %v1651 = vxor.u32 %v1144, 2147483648
    %v1652 = vxor.u32 %v1149, 2147483648
    %v1653 = vxor.u32 %v1154, 2147483648
    %v1654 = vxor.u32 %v1236, 2147483648
    %v1655 = vxor.u32 %v1241, 2147483648
    %v1656 = vxor.u32 %v1246, 2147483648
    %v1657 = vxor.u32 %v1251, 2147483648
    %v1658 = vxor.u32 %v1333, 2147483648
    %v1659 = vxor.u32 %v1338, 2147483648
    %v1660 = vxor.u32 %v1343, 2147483648
    %v1661 = vxor.u32 %v1348, 2147483648
    %v1662 = vxor.u32 %v1430, 2147483648
    %v1663 = vxor.u32 %v1435, 2147483648
    %v1664 = vxor.u32 %v1440, 2147483648
    %v1665 = vxor.u32 %v1445, 2147483648
    %v1666 = vxor.u32 %v1527, 2147483648
    %v1667 = vxor.u32 %v1532, 2147483648
    %v1668 = vxor.u32 %v1537, 2147483648
    %v1669 = vxor.u32 %v1542, 2147483648
    %v1670 = vxor.u32 %v1624, 2147483648
    %v1671 = vxor.u32 %v1629, 2147483648
    %v1672 = vxor.u32 %v1634, 2147483648
    %v1673 = vxor.u32 %v1639, 2147483648
    %v1674 = vmul.f32 %v1642, 1.442695
    %v1675 = vpow.pop %v1674
    %v1676 = vmul.f32 %v1643, 1.442695
    %v1677 = vpow.pop %v1676
    %v1678 = vmul.f32 %v1644, 1.442695
    %v1679 = vpow.pop %v1678
    %v1680 = vmul.f32 %v1645, 1.442695
    %v1681 = vpow.pop %v1680
    %v1682 = vmul.f32 %v1646, 1.442695
    %v1683 = vpow.pop %v1682
    %v1684 = vmul.f32 %v1647, 1.442695
    %v1685 = vpow.pop %v1684
    %v1686 = vmul.f32 %v1648, 1.442695
    %v1687 = vpow.pop %v1686
    %v1688 = vmul.f32 %v1649, 1.442695
    %v1689 = vpow.pop %v1688
    %v1690 = vmul.f32 %v1650, 1.442695
    %v1691 = vpow.pop %v1690
    %v1692 = vmul.f32 %v1651, 1.442695
    %v1693 = vpow.pop %v1692
    %v1694 = vmul.f32 %v1652, 1.442695
    %v1695 = vpow.pop %v1694
    %v1696 = vmul.f32 %v1653, 1.442695
    %v1697 = vpow.pop %v1696
    %v1698 = vmul.f32 %v1654, 1.442695
    %v1699 = vpow.pop %v1698
    %v1700 = vmul.f32 %v1655, 1.442695
    %v1701 = vpow.pop %v1700
    %v1702 = vmul.f32 %v1656, 1.442695
    %v1703 = vpow.pop %v1702
    %v1704 = vmul.f32 %v1657, 1.442695
    %v1705 = vpow.pop %v1704
    %v1706 = vmul.f32 %v1658, 1.442695
    %v1707 = vpow.pop %v1706
    %v1708 = vmul.f32 %v1659, 1.442695
    %v1709 = vpow.pop %v1708
    %v1710 = vmul.f32 %v1660, 1.442695
    %v1711 = vpow.pop %v1710
    %v1712 = vmul.f32 %v1661, 1.442695
    %v1713 = vpow.pop %v1712
    %v1714 = vmul.f32 %v1662, 1.442695
    %v1715 = vpow.pop %v1714
    %v1716 = vmul.f32 %v1663, 1.442695
    %v1717 = vpow.pop %v1716
    %v1718 = vmul.f32 %v1664, 1.442695
    %v1719 = vpow.pop %v1718
    %v1720 = vmul.f32 %v1665, 1.442695
    %v1721 = vpow.pop %v1720
    %v1722 = vmul.f32 %v1666, 1.442695
    %v1723 = vpow.pop %v1722
    %v1724 = vmul.f32 %v1667, 1.442695
    %v1725 = vpow.pop %v1724
    %v1726 = vmul.f32 %v1668, 1.442695
    %v1727 = vpow.pop %v1726
    %v1728 = vmul.f32 %v1669, 1.442695
    %v1729 = vpow.pop %v1728
    %v1730 = vmul.f32 %v1670, 1.442695
    %v1731 = vpow.pop %v1730
    %v1732 = vmul.f32 %v1671, 1.442695
    %v1733 = vpow.pop %v1732
    %v1734 = vmul.f32 %v1672, 1.442695
    %v1735 = vpow.pop %v1734
    %v1736 = vmul.f32 %v1673, 1.442695
    %v1737 = vpow.pop %v1736
    %v1738 = vadd.f32 %v1675, 1.0
    %v1739 = vadd.f32 %v1677, 1.0
    %v1740 = vadd.f32 %v1679, 1.0
    %v1741 = vadd.f32 %v1681, 1.0
    %v1742 = vadd.f32 %v1683, 1.0
    %v1743 = vadd.f32 %v1685, 1.0
    %v1744 = vadd.f32 %v1687, 1.0
    %v1745 = vadd.f32 %v1689, 1.0
    %v1746 = vadd.f32 %v1691, 1.0
    %v1747 = vadd.f32 %v1693, 1.0
    %v1748 = vadd.f32 %v1695, 1.0
    %v1749 = vadd.f32 %v1697, 1.0
    %v1750 = vadd.f32 %v1699, 1.0
    %v1751 = vadd.f32 %v1701, 1.0
    %v1752 = vadd.f32 %v1703, 1.0
    %v1753 = vadd.f32 %v1705, 1.0
    %v1754 = vadd.f32 %v1707, 1.0
    %v1755 = vadd.f32 %v1709, 1.0
    %v1756 = vadd.f32 %v1711, 1.0
    %v1757 = vadd.f32 %v1713, 1.0
    %v1758 = vadd.f32 %v1715, 1.0
    %v1759 = vadd.f32 %v1717, 1.0
    %v1760 = vadd.f32 %v1719, 1.0
    %v1761 = vadd.f32 %v1721, 1.0
    %v1762 = vadd.f32 %v1723, 1.0
    %v1763 = vadd.f32 %v1725, 1.0
    %v1764 = vadd.f32 %v1727, 1.0
    %v1765 = vadd.f32 %v1729, 1.0
    %v1766 = vadd.f32 %v1731, 1.0
    %v1767 = vadd.f32 %v1733, 1.0
    %v1768 = vadd.f32 %v1735, 1.0
    %v1769 = vadd.f32 %v1737, 1.0
    %v1770 = vrcp.pop %v1738
    %v1771 = vmul.f32 1.0, %v1770
    %v1772 = vrcp.pop %v1739
    %v1773 = vmul.f32 1.0, %v1772
    %v1774 = vrcp.pop %v1740
    %v1775 = vmul.f32 1.0, %v1774
    %v1776 = vrcp.pop %v1741
    %v1777 = vmul.f32 1.0, %v1776
    %v1778 = vrcp.pop %v1742
    %v1779 = vmul.f32 1.0, %v1778
    %v1780 = vrcp.pop %v1743
    %v1781 = vmul.f32 1.0, %v1780
    %v1782 = vrcp.pop %v1744
    %v1783 = vmul.f32 1.0, %v1782
    %v1784 = vrcp.pop %v1745
    %v1785 = vmul.f32 1.0, %v1784
    %v1786 = vrcp.pop %v1746
    %v1787 = vmul.f32 1.0, %v1786
    %v1788 = vrcp.pop %v1747
    %v1789 = vmul.f32 1.0, %v1788
    %v1790 = vrcp.pop %v1748
    %v1791 = vmul.f32 1.0, %v1790
    %v1792 = vrcp.pop %v1749
    %v1793 = vmul.f32 1.0, %v1792
    %v1794 = vrcp.pop %v1750
    %v1795 = vmul.f32 1.0, %v1794
    %v1796 = vrcp.pop %v1751
    %v1797 = vmul.f32 1.0, %v1796
    %v1798 = vrcp.pop %v1752
    %v1799 = vmul.f32 1.0, %v1798
    %v1800 = vrcp.pop %v1753
    %v1801 = vmul.f32 1.0, %v1800
    %v1802 = vrcp.pop %v1754
    %v1803 = vmul.f32 1.0, %v1802
    %v1804 = vrcp.pop %v1755
    %v1805 = vmul.f32 1.0, %v1804
    %v1806 = vrcp.pop %v1756
    %v1807 = vmul.f32 1.0, %v1806
    %v1808 = vrcp.pop %v1757
    %v1809 = vmul.f32 1.0, %v1808
    %v1810 = vrcp.pop %v1758
    %v1811 = vmul.f32 1.0, %v1810
    %v1812 = vrcp.pop %v1759
    %v1813 = vmul.f32 1.0, %v1812
    %v1814 = vrcp.pop %v1760
    %v1815 = vmul.f32 1.0, %v1814
    %v1816 = vrcp.pop %v1761
    %v1817 = vmul.f32 1.0, %v1816
    %v1818 = vrcp.pop %v1762
    %v1819 = vmul.f32 1.0, %v1818
    %v1820 = vrcp.pop %v1763
    %v1821 = vmul.f32 1.0, %v1820
    %v1822 = vrcp.pop %v1764
    %v1823 = vmul.f32 1.0, %v1822
    %v1824 = vrcp.pop %v1765
    %v1825 = vmul.f32 1.0, %v1824
    %v1826 = vrcp.pop %v1766
    %v1827 = vmul.f32 1.0, %v1826
    %v1828 = vrcp.pop %v1767
    %v1829 = vmul.f32 1.0, %v1828
    %v1830 = vrcp.pop %v1768
    %v1831 = vmul.f32 1.0, %v1830
    %v1832 = vrcp.pop %v1769
    %v1833 = vmul.f32 1.0, %v1832
    %1835 = vset.pattern.permute.xlu0 0
    %1836 = vperm.xlu0 %1835, %v1771
    %v1837 = vpop.permute.xlu0 %1836
    %1840 = vset.pattern.permute.xlu0 0
    %1841 = vperm.xlu0 %1840, %v1773
    %v1842 = vpop.permute.xlu0 %1841
    %1845 = vset.pattern.permute.xlu0 0
    %1846 = vperm.xlu0 %1845, %v1775
    %v1847 = vpop.permute.xlu0 %1846
    %1850 = vset.pattern.permute.xlu0 0
    %1851 = vperm.xlu0 %1850, %v1777
    %v1852 = vpop.permute.xlu0 %1851
    %1855 = vset.pattern.permute.xlu0 0
    %1856 = vperm.xlu0 %1855, %v1779
    %v1857 = vpop.permute.xlu0 %1856
    %1860 = vset.pattern.permute.xlu0 0
    %1861 = vperm.xlu0 %1860, %v1781
    %v1862 = vpop.permute.xlu0 %1861
    %1865 = vset.pattern.permute.xlu0 0
    %1866 = vperm.xlu0 %1865, %v1783
    %v1867 = vpop.permute.xlu0 %1866
    %1870 = vset.pattern.permute.xlu0 0
    %1871 = vperm.xlu0 %1870, %v1785
    %v1872 = vpop.permute.xlu0 %1871
    %1875 = vset.pattern.permute.xlu0 0
    %1876 = vperm.xlu0 %1875, %v1787
    %v1877 = vpop.permute.xlu0 %1876
    %1880 = vset.pattern.permute.xlu0 0
    %1881 = vperm.xlu0 %1880, %v1789
    %v1882 = vpop.permute.xlu0 %1881
    %1885 = vset.pattern.permute.xlu0 0
    %1886 = vperm.xlu0 %1885, %v1791
    %v1887 = vpop.permute.xlu0 %1886
    %1890 = vset.pattern.permute.xlu0 0
    %1891 = vperm.xlu0 %1890, %v1793
    %v1892 = vpop.permute.xlu0 %1891
    %1895 = vset.pattern.permute.xlu0 0
    %1896 = vperm.xlu0 %1895, %v1795
    %v1897 = vpop.permute.xlu0 %1896
    %1900 = vset.pattern.permute.xlu0 0
    %1901 = vperm.xlu0 %1900, %v1797
    %v1902 = vpop.permute.xlu0 %1901
    %1905 = vset.pattern.permute.xlu0 0
    %1906 = vperm.xlu0 %1905, %v1799
    %v1907 = vpop.permute.xlu0 %1906
    %1910 = vset.pattern.permute.xlu0 0
    %1911 = vperm.xlu0 %1910, %v1801
    %v1912 = vpop.permute.xlu0 %1911
    %1915 = vset.pattern.permute.xlu0 0
    %1916 = vperm.xlu0 %1915, %v1803
    %v1917 = vpop.permute.xlu0 %1916
    %1920 = vset.pattern.permute.xlu0 0
    %1921 = vperm.xlu0 %1920, %v1805
    %v1922 = vpop.permute.xlu0 %1921
    %1925 = vset.pattern.permute.xlu0 0
    %1926 = vperm.xlu0 %1925, %v1807
    %v1927 = vpop.permute.xlu0 %1926
    %1930 = vset.pattern.permute.xlu0 0
    %1931 = vperm.xlu0 %1930, %v1809
    %v1932 = vpop.permute.xlu0 %1931
    %1935 = vset.pattern.permute.xlu0 0
    %1936 = vperm.xlu0 %1935, %v1811
    %v1937 = vpop.permute.xlu0 %1936
    %1940 = vset.pattern.permute.xlu0 0
    %1941 = vperm.xlu0 %1940, %v1813
    %v1942 = vpop.permute.xlu0 %1941
    %1945 = vset.pattern.permute.xlu0 0
    %1946 = vperm.xlu0 %1945, %v1815
    %v1947 = vpop.permute.xlu0 %1946
    %1950 = vset.pattern.permute.xlu0 0
    %1951 = vperm.xlu0 %1950, %v1817
    %v1952 = vpop.permute.xlu0 %1951
    %1955 = vset.pattern.permute.xlu0 0
    %1956 = vperm.xlu0 %1955, %v1819
    %v1957 = vpop.permute.xlu0 %1956
    %1960 = vset.pattern.permute.xlu0 0
    %1961 = vperm.xlu0 %1960, %v1821
    %v1962 = vpop.permute.xlu0 %1961
    %1965 = vset.pattern.permute.xlu0 0
    %1966 = vperm.xlu0 %1965, %v1823
    %v1967 = vpop.permute.xlu0 %1966
    %1970 = vset.pattern.permute.xlu0 0
    %1971 = vperm.xlu0 %1970, %v1825
    %v1972 = vpop.permute.xlu0 %1971
    %1975 = vset.pattern.permute.xlu0 0
    %1976 = vperm.xlu0 %1975, %v1827
    %v1977 = vpop.permute.xlu0 %1976
    %1980 = vset.pattern.permute.xlu0 0
    %1981 = vperm.xlu0 %1980, %v1829
    %v1982 = vpop.permute.xlu0 %1981
    %1985 = vset.pattern.permute.xlu0 0
    %1986 = vperm.xlu0 %1985, %v1831
    %v1987 = vpop.permute.xlu0 %1986
    %1990 = vset.pattern.permute.xlu0 0
    %1991 = vperm.xlu0 %1990, %v1833
    %v1992 = vpop.permute.xlu0 %1991
    %v1994 = vmul.f32 %v35, %v1837
    %v1995 = vmul.f32 %v36, %v1837
    %v1996 = vmul.f32 %v37, %v1842
    %v1997 = vmul.f32 %v38, %v1842
    %v1998 = vmul.f32 %v39, %v1847
    %v1999 = vmul.f32 %v40, %v1847
    %v2000 = vmul.f32 %v41, %v1852
    %v2001 = vmul.f32 %v42, %v1852
    %v2002 = vmul.f32 %v43, %v1857
    %v2003 = vmul.f32 %v44, %v1857
    %v2004 = vmul.f32 %v45, %v1862
    %v2005 = vmul.f32 %v46, %v1862
    %v2006 = vmul.f32 %v47, %v1867
    %v2007 = vmul.f32 %v48, %v1867
    %v2008 = vmul.f32 %v49, %v1872
    %v2009 = vmul.f32 %v50, %v1872
    %v2010 = vmul.f32 %v51, %v1877
    %v2011 = vmul.f32 %v52, %v1877
    %v2012 = vmul.f32 %v53, %v1882
    %v2013 = vmul.f32 %v54, %v1882
    %v2014 = vmul.f32 %v55, %v1887
    %v2015 = vmul.f32 %v56, %v1887
    %v2016 = vmul.f32 %v57, %v1892
    %v2017 = vmul.f32 %v58, %v1892
    %v2018 = vmul.f32 %v59, %v1897
    %v2019 = vmul.f32 %v60, %v1897
    %v2020 = vmul.f32 %v61, %v1902
    %v2021 = vmul.f32 %v62, %v1902
    %v2022 = vmul.f32 %v63, %v1907
    %v2023 = vmul.f32 %v64, %v1907
    %v2024 = vmul.f32 %v65, %v1912
    %v2025 = vmul.f32 %v66, %v1912
    %v2026 = vmul.f32 %v67, %v1917
    %v2027 = vmul.f32 %v68, %v1917
    %v2028 = vmul.f32 %v69, %v1922
    %v2029 = vmul.f32 %v70, %v1922
    %v2030 = vmul.f32 %v71, %v1927
    %v2031 = vmul.f32 %v72, %v1927
    %v2032 = vmul.f32 %v73, %v1932
    %v2033 = vmul.f32 %v74, %v1932
    %v2034 = vmul.f32 %v75, %v1937
    %v2035 = vmul.f32 %v76, %v1937
    %v2036 = vmul.f32 %v77, %v1942
    %v2037 = vmul.f32 %v78, %v1942
    %v2038 = vmul.f32 %v79, %v1947
    %v2039 = vmul.f32 %v80, %v1947
    %v2040 = vmul.f32 %v81, %v1952
    %v2041 = vmul.f32 %v82, %v1952
    %v2042 = vmul.f32 %v83, %v1957
    %v2043 = vmul.f32 %v84, %v1957
    %v2044 = vmul.f32 %v85, %v1962
    %v2045 = vmul.f32 %v86, %v1962
    %v2046 = vmul.f32 %v87, %v1967
    %v2047 = vmul.f32 %v88, %v1967
    %v2048 = vmul.f32 %v89, %v1972
    %v2049 = vmul.f32 %v90, %v1972
    %v2050 = vmul.f32 %v91, %v1977
    %v2051 = vmul.f32 %v92, %v1977
    %v2052 = vmul.f32 %v93, %v1982
    %v2053 = vmul.f32 %v94, %v1982
    %v2054 = vmul.f32 %v95, %v1987
    %v2055 = vmul.f32 %v96, %v1987
    %v2056 = vmul.f32 %v97, %v1992
    %v2057 = vmul.f32 %v98, %v1992
    %2058 = vst [vmem:[#allocation5] sm:$0xff] %v1994
    %2059 = vst [vmem:[#allocation5 + $0x8] sm:$0xff] %v1995
    %2060 = vst [vmem:[#allocation5 + $0x10] sm:$0xff] %v1996
    %2061 = vst [vmem:[#allocation5 + $0x18] sm:$0xff] %v1997
    %2062 = vst [vmem:[#allocation5 + $0x20] sm:$0xff] %v1998
    %2063 = vst [vmem:[#allocation5 + $0x28] sm:$0xff] %v1999
    %2064 = vst [vmem:[#allocation5 + $0x30] sm:$0xff] %v2000
    %2065 = vst [vmem:[#allocation5 + $0x38] sm:$0xff] %v2001
    %2066 = vst [vmem:[#allocation5 + $0x40] sm:$0xff] %v2002
    %2067 = vst [vmem:[#allocation5 + $0x48] sm:$0xff] %v2003
    %2068 = vst [vmem:[#allocation5 + $0x50] sm:$0xff] %v2004
    %2069 = vst [vmem:[#allocation5 + $0x58] sm:$0xff] %v2005
    %2070 = vst [vmem:[#allocation5 + $0x60] sm:$0xff] %v2006
    %2071 = vst [vmem:[#allocation5 + $0x68] sm:$0xff] %v2007
    %2072 = vst [vmem:[#allocation5 + $0x70] sm:$0xff] %v2008
    %2073 = vst [vmem:[#allocation5 + $0x78] sm:$0xff] %v2009
    %2074 = vst [vmem:[#allocation5 + $0x80] sm:$0xff] %v2010
    %2075 = vst [vmem:[#allocation5 + $0x88] sm:$0xff] %v2011
    %2076 = vst [vmem:[#allocation5 + $0x90] sm:$0xff] %v2012
    %2077 = vst [vmem:[#allocation5 + $0x98] sm:$0xff] %v2013
    %2078 = vst [vmem:[#allocation5 + $0xa0] sm:$0xff] %v2014
    %2079 = vst [vmem:[#allocation5 + $0xa8] sm:$0xff] %v2015
    %2080 = vst [vmem:[#allocation5 + $0xb0] sm:$0xff] %v2016
    %2081 = vst [vmem:[#allocation5 + $0xb8] sm:$0xff] %v2017
    %2082 = vst [vmem:[#allocation5 + $0xc0] sm:$0xff] %v2018
    %2083 = vst [vmem:[#allocation5 + $0xc8] sm:$0xff] %v2019
    %2084 = vst [vmem:[#allocation5 + $0xd0] sm:$0xff] %v2020
    %2085 = vst [vmem:[#allocation5 + $0xd8] sm:$0xff] %v2021
    %2086 = vst [vmem:[#allocation5 + $0xe0] sm:$0xff] %v2022
    %2087 = vst [vmem:[#allocation5 + $0xe8] sm:$0xff] %v2023
    %2088 = vst [vmem:[#allocation5 + $0xf0] sm:$0xff] %v2024
    %2089 = vst [vmem:[#allocation5 + $0xf8] sm:$0xff] %v2025
    %2090 = vst [vmem:[#allocation5 + $0x100] sm:$0xff] %v2026
    %2091 = vst [vmem:[#allocation5 + $0x108] sm:$0xff] %v2027
    %2092 = vst [vmem:[#allocation5 + $0x110] sm:$0xff] %v2028
    %2093 = vst [vmem:[#allocation5 + $0x118] sm:$0xff] %v2029
    %2094 = vst [vmem:[#allocation5 + $0x120] sm:$0xff] %v2030
    %2095 = vst [vmem:[#allocation5 + $0x128] sm:$0xff] %v2031
    %2096 = vst [vmem:[#allocation5 + $0x130] sm:$0xff] %v2032
    %2097 = vst [vmem:[#allocation5 + $0x138] sm:$0xff] %v2033
    %2098 = vst [vmem:[#allocation5 + $0x140] sm:$0xff] %v2034
    %2099 = vst [vmem:[#allocation5 + $0x148] sm:$0xff] %v2035
    %2100 = vst [vmem:[#allocation5 + $0x150] sm:$0xff] %v2036
    %2101 = vst [vmem:[#allocation5 + $0x158] sm:$0xff] %v2037
    %2102 = vst [vmem:[#allocation5 + $0x160] sm:$0xff] %v2038
    %2103 = vst [vmem:[#allocation5 + $0x168] sm:$0xff] %v2039
    %2104 = vst [vmem:[#allocation5 + $0x170] sm:$0xff] %v2040
    %2105 = vst [vmem:[#allocation5 + $0x178] sm:$0xff] %v2041
    %2106 = vst [vmem:[#allocation5 + $0x180] sm:$0xff] %v2042
    %2107 = vst [vmem:[#allocation5 + $0x188] sm:$0xff] %v2043
    %2108 = vst [vmem:[#allocation5 + $0x190] sm:$0xff] %v2044
    %2109 = vst [vmem:[#allocation5 + $0x198] sm:$0xff] %v2045
    %2110 = vst [vmem:[#allocation5 + $0x1a0] sm:$0xff] %v2046
    %2111 = vst [vmem:[#allocation5 + $0x1a8] sm:$0xff] %v2047
    %2112 = vst [vmem:[#allocation5 + $0x1b0] sm:$0xff] %v2048
    %2113 = vst [vmem:[#allocation5 + $0x1b8] sm:$0xff] %v2049
    %2114 = vst [vmem:[#allocation5 + $0x1c0] sm:$0xff] %v2050
    %2115 = vst [vmem:[#allocation5 + $0x1c8] sm:$0xff] %v2051
    %2116 = vst [vmem:[#allocation5 + $0x1d0] sm:$0xff] %v2052
    %2117 = vst [vmem:[#allocation5 + $0x1d8] sm:$0xff] %v2053
    %2118 = vst [vmem:[#allocation5 + $0x1e0] sm:$0xff] %v2054
    %2119 = vst [vmem:[#allocation5 + $0x1e8] sm:$0xff] %v2055
    %2120 = vst [vmem:[#allocation5 + $0x1f0] sm:$0xff] %v2056
    %2121 = vst [vmem:[#allocation5 + $0x1f8] sm:$0xff] %v2057
    // Predicated region
    $region26: #{tpu_custom_call.1} parent=1 // pred_check
      _
    $region27: #{tpu_custom_call.1} parent=1 // pred_check_branch
      %2123 = sbr.rel (0) target = $region29
    $region28: #{tpu_custom_call.1} parent=1 // pred_region
      %s2125 = ssub.s32 8192, 8192
      %2126 = vsyncadd [#allocation4], %s2125
      %s2127 = sshll.u32 [#allocation5], 4
      %s2128 = int_to_ptr.vmem [resolvable:$true] %s2127
      %2133 = dma.vmem_to_hbm [thread:$0]  %s2128, 8192, %s5, [#allocation4], 256, 256, 16
    $region29: #{tpu_custom_call.1} parent=1 // pred_fallthru
      _
    // Predicated region
    $region30: #{tpu_custom_call.1} parent=1 // pred_check
      _
    $region31: #{tpu_custom_call.1} parent=1 // pred_check_branch
      %2135 = sbr.rel (0) target = $region33
    $region32: #{tpu_custom_call.1} parent=1 // pred_region
      %2136 = dma.done [#allocation4], 8192
    $region33: #{tpu_custom_call.1} parent=1 // pred_fallthru
      _
    %2137 = vsyncpa [#allocation3], 1
    %2138 = vsyncpa [#allocation4], 1

</llo_original>
